<compile_context>
chip_gen: v7x
topology: tpu7x:2x2x1
jax: 0.10.0
libtpu: 0.0.40
codegen_flags: <defaults>
</compile_context>

<pallas_src>
import functools

import jax
import jax.numpy as jnp
from jax import lax
from jax.experimental import pallas as pl
from jax.experimental.pallas import tpu as pltpu


# ----------------------------------------------------------------------------
# helpers
# ----------------------------------------------------------------------------
def _round_up(x, m):
    return (x + m - 1) // m * m


def _out_size(size, kernel_size, stride):
    return (size - kernel_size) // stride + 1


def _choose_tile(dim, max_tile):
    """Largest tile <= max_tile that divides `dim` and is a multiple of 128.

    If `dim` is not a multiple of 128 (or already <= max_tile) use the full
    dimension: a full-extent block is always a legal BlockSpec and avoids any
    activation padding.
    """
    if dim <= max_tile or dim % 128 != 0:
        return dim
    t = (max_tile // 128) * 128
    while t >= 128:
        if dim % t == 0:
            return t
        t -= 128
    return dim


def _prep_rows(x, tm_max):
    """Pick the M tile; pad rows only when M actually needs tiling."""
    m = x.shape[0]
    if m <= tm_max:
        return x, m, m
    tm = tm_max
    mp = _round_up(m, tm)
    if mp != m:
        x = jnp.pad(x, ((0, mp - m), (0, 0)))
    return x, tm, mp


# ----------------------------------------------------------------------------
# Pallas kernels
# ----------------------------------------------------------------------------
def _gemm_bias_kernel(x_ref, w_ref, b_ref, o_ref, acc_ref, *, relu):
    """Tiled GEMM with f32 accumulation, bias (+ReLU) epilogue."""
    k = pl.program_id(2)

    @pl.when(k == 0)
    def _():
        acc_ref[...] = jnp.zeros_like(acc_ref)

    acc_ref[...] += jnp.dot(x_ref[...], w_ref[...],
                            preferred_element_type=jnp.float32)

    @pl.when(k == pl.num_programs(2) - 1)
    def _():
        r = acc_ref[...] + b_ref[...]
        if relu:
            r = jnp.maximum(r, 0.0)
        o_ref[...] = r.astype(o_ref.dtype)


def _fc_head_kernel(x_ref, w1_ref, b1_ref, w2_ref, b2_ref, o_ref, acc_ref):
    """Fused fc1 (ReLU) + output Linear. Second (tiny) dot runs in the
    k==last epilogue on the resident (tm, 512) accumulator tile."""
    k = pl.program_id(1)

    @pl.when(k == 0)
    def _():
        acc_ref[...] = jnp.zeros_like(acc_ref)

    acc_ref[...] += jnp.dot(x_ref[...], w1_ref[...],
                            preferred_element_type=jnp.float32)

    @pl.when(k == pl.num_programs(1) - 1)
    def _():
        h = jnp.maximum(acc_ref[...] + b1_ref[...], 0.0)
        q = jnp.dot(h.astype(jnp.bfloat16), w2_ref[...],
                    preferred_element_type=jnp.float32) + b2_ref[...]
        o_ref[...] = q.astype(o_ref.dtype)


# ----------------------------------------------------------------------------
# Pallas wrappers
# ----------------------------------------------------------------------------
def matmul_bias_act(x, w, b, *, relu, out_dtype,
                    tm_max=256, tn_max=512, tk_max=512):
    """x: (M, K) bf16, w: (K, N) bf16, b: (1, N) f32 -> (M, N) out_dtype."""
    m0, kdim = x.shape
    kw, n = w.shape
    assert kdim == kw, (kdim, kw)

    x = x.astype(jnp.bfloat16)
    x, tm, mp = _prep_rows(x, tm_max)
    tk = _choose_tile(kdim, tk_max)
    tn = _choose_tile(n, tn_max)
    grid = (mp // tm, n // tn, kdim // tk)

    kernel = functools.partial(_gemm_bias_kernel, relu=relu)
    out = pl.pallas_call(
        kernel,
        out_shape=jax.ShapeDtypeStruct((mp, n), out_dtype),
        grid=grid,
        in_specs=[
            pl.BlockSpec((tm, tk), lambda i, j, k: (i, k)),
            pl.BlockSpec((tk, tn), lambda i, j, k: (k, j)),
            pl.BlockSpec((1, tn), lambda i, j, k: (0, j)),
        ],
        out_specs=pl.BlockSpec((tm, tn), lambda i, j, k: (i, j)),
        scratch_shapes=[pltpu.VMEM((tm, tn), jnp.float32)],
        compiler_params=pltpu.CompilerParams(
            dimension_semantics=("parallel", "parallel", "arbitrary")),
    )(x, w, b)
    if mp != m0:
        out = out[:m0]
    return out


def fc_head(x, w1, b1, w2, b2, *, tm_max=256, tk_max=512):
    """Fused fc1(ReLU) + output layer.

    x: (M, K) bf16, w1: (K, H) bf16, b1: (1, H) f32,
    w2: (H, N2p) bf16 (lane-padded), b2: (1, N2p) f32 -> (M, N2p) f32.
    """
    m0, kdim = x.shape
    _, hdim = w1.shape
    _, n2 = w2.shape

    x = x.astype(jnp.bfloat16)
    x, tm, mp = _prep_rows(x, tm_max)
    tk = _choose_tile(kdim, tk_max)
    grid = (mp // tm, kdim // tk)

    out = pl.pallas_call(
        _fc_head_kernel,
        out_shape=jax.ShapeDtypeStruct((mp, n2), jnp.float32),
        grid=grid,
        in_specs=[
            pl.BlockSpec((tm, tk), lambda i, k: (i, k)),
            pl.BlockSpec((tk, hdim), lambda i, k: (k, 0)),
            pl.BlockSpec((1, hdim), lambda i, k: (0, 0)),
            pl.BlockSpec((hdim, n2), lambda i, k: (0, 0)),
            pl.BlockSpec((1, n2), lambda i, k: (0, 0)),
        ],
        out_specs=pl.BlockSpec((tm, n2), lambda i, k: (i, 0)),
        scratch_shapes=[pltpu.VMEM((tm, hdim), jnp.float32)],
        compiler_params=pltpu.CompilerParams(
            dimension_semantics=("parallel", "arbitrary")),
    )(x, w1, b1, w2, b2)
    if mp != m0:
        out = out[:m0]
    return out


def conv2d_relu(x, w_packed, b_packed, kh, kw, stride):
    """Valid-padding strided conv via NHWC im2col + fused Pallas GEMM.

    x: (B, H, W, C) bf16; w_packed: (KH*KW*C, O) bf16, rows in (kh, kw, c)
    order; b_packed: (1, O) f32. Returns (B, OH, OW, O) bf16.
    """
    bsz, h, w, c = x.shape
    oh = _out_size(h, kh, stride)
    ow = _out_size(w, kw, stride)

    cols = []
    for di in range(kh):
        for dj in range(kw):
            cols.append(
                x[:, di:di + stride * oh:stride, dj:dj + stride * ow:stride, :])
    patches = jnp.concatenate(cols, axis=-1)           # (B, OH, OW, KH*KW*C)
    patches = patches.reshape(bsz * oh * ow, kh * kw * c)

    y = matmul_bias_act(patches, w_packed, b_packed,
                        relu=True, out_dtype=jnp.bfloat16)
    return y.reshape(bsz, oh, ow, -1)


# ----------------------------------------------------------------------------
# parameters
# ----------------------------------------------------------------------------
def init_params(key, input_shape, num_actions):
    """PyTorch-layout (NCHW / OIHW) float32 parameters."""
    c, h, w = input_shape
    h1, w1 = _out_size(h, 8, 4), _out_size(w, 8, 4)
    h2, w2 = _out_size(h1, 4, 2), _out_size(w1, 4, 2)
    h3, w3 = _out_size(h2, 2, 1), _out_size(w2, 2, 1)
    fc_in = h3 * w3 * 64

    ks = jax.random.split(key, 10)
    s = 0.05
    return {
        "conv1_w": s * jax.random.normal(ks[0], (32, c, 8, 8), jnp.float32),
        "conv1_b": s * jax.random.normal(ks[1], (32,), jnp.float32),
        "conv2_w": s * jax.random.normal(ks[2], (64, 32, 4, 4), jnp.float32),
        "conv2_b": s * jax.random.normal(ks[3], (64,), jnp.float32),
        "conv3_w": s * jax.random.normal(ks[4], (64, 64, 2, 2), jnp.float32),
        "conv3_b": s * jax.random.normal(ks[5], (64,), jnp.float32),
        # Linear weights stored as (in, out), rows in PyTorch (c, h, w) order.
        "fc1_w": s * jax.random.normal(ks[6], (fc_in, 512), jnp.float32),
        "fc1_b": s * jax.random.normal(ks[7], (512,), jnp.float32),
        "out_w": s * jax.random.normal(ks[8], (512, num_actions), jnp.float32),
        "out_b": s * jax.random.normal(ks[9], (num_actions,), jnp.float32),
    }


def pack_params(params, input_shape):
    """One-time layout/dtype packing for the Pallas kernels (not per call):
    conv weights -> (kh*kw*c, O) bf16; fc1 rows reordered to NHWC flatten
    order; output head lane-padded to a multiple of 128; biases -> (1, N) f32.
    """
    _, h, w = input_shape
    h1, w1 = _out_size(h, 8, 4), _out_size(w, 8, 4)
    h2, w2 = _out_size(h1, 4, 2), _out_size(w1, 4, 2)
    h3, w3 = _out_size(h2, 2, 1), _out_size(w2, 2, 1)

    def pack_conv(wt, bt):
        o, c, kh, kw = wt.shape
        wm = jnp.transpose(wt, (2, 3, 1, 0)).reshape(kh * kw * c, o)
        return wm.astype(jnp.bfloat16), bt.reshape(1, o).astype(jnp.float32)

    c1w, c1b = pack_conv(params["conv1_w"], params["conv1_b"])
    c2w, c2b = pack_conv(params["conv2_w"], params["conv2_b"])
    c3w, c3b = pack_conv(params["conv3_w"], params["conv3_b"])

    # fc1 rows are in PyTorch NCHW-flatten order (c, h, w) -> reorder to (h, w, c).
    fc1_w = params["fc1_w"].reshape(64, h3, w3, 512)
    fc1_w = jnp.transpose(fc1_w, (1, 2, 0, 3)).reshape(h3 * w3 * 64, 512)

    n_act = params["out_w"].shape[1]
    n_pad = _round_up(n_act, 128)
    out_w = jnp.pad(params["out_w"], ((0, 0), (0, n_pad - n_act)))
    out_b = jnp.pad(params["out_b"], (0, n_pad - n_act))

    return {
        "conv1_w": c1w, "conv1_b": c1b,
        "conv2_w": c2w, "conv2_b": c2b,
        "conv3_w": c3w, "conv3_b": c3b,
        "fc1_w": fc1_w.astype(jnp.bfloat16),
        "fc1_b": params["fc1_b"].reshape(1, 512).astype(jnp.float32),
        "out_w": out_w.astype(jnp.bfloat16),
        "out_b": out_b.reshape(1, n_pad).astype(jnp.float32),
    }


# ----------------------------------------------------------------------------
# forward passes
# ----------------------------------------------------------------------------
def dqn_forward(packed, x, num_actions):
    """x: (B, C, H, W) f32 (PyTorch layout). Returns (B, num_actions) f32."""
    x = x.transpose(0, 2, 3, 1).astype(jnp.bfloat16)          # NHWC, once
    x = conv2d_relu(x, packed["conv1_w"], packed["conv1_b"], 8, 8, 4)
    x = conv2d_relu(x, packed["conv2_w"], packed["conv2_b"], 4, 4, 2)
    x = conv2d_relu(x, packed["conv3_w"], packed["conv3_b"], 2, 2, 1)
    b = x.shape[0]
    x = x.reshape(b, -1)          # NHWC flatten (matches reordered fc1 rows)
    q = fc_head(x, packed["fc1_w"], packed["fc1_b"],
                packed["out_w"], packed["out_b"])
    return q[:, :num_actions]


def ref_forward(params, x):
    """Pure-JAX f32 reference with PyTorch semantics (for verification)."""
    def conv(x, w, b, stride):
        y = lax.conv_general_dilated(
            x, w, (stride, stride), "VALID",
            dimension_numbers=("NCHW", "OIHW", "NCHW"))
        return jax.nn.relu(y + b[None, :, None, None])

    x = conv(x, params["conv1_w"], params["conv1_b"], 4)
    x = conv(x, params["conv2_w"], params["conv2_b"], 2)
    x = conv(x, params["conv3_w"], params["conv3_b"], 1)
    x = x.reshape(x.shape[0], -1)
    x = jax.nn.relu(x @ params["fc1_w"] + params["fc1_b"])
    return x @ params["out_w"] + params["out_b"]


# ----------------------------------------------------------------------------
if __name__ == "__main__":
    # 32x32 input -> 7x7 -> 2x2 -> 1x1 spatial, fc_input = 64.
    input_shape = (4, 32, 32)   # (C, H, W)
    num_actions = 6
    batch = 2

    key = jax.random.PRNGKey(0)
    pkey, xkey = jax.random.split(key)
    params = init_params(pkey, input_shape, num_actions)
    packed = pack_params(params, input_shape)
    x = jax.random.uniform(
        xkey, (batch,) + input_shape, dtype=jnp.float32, minval=0.0, maxval=1.0)

    fwd = jax.jit(dqn_forward, static_argnums=(2,))
    q_values = fwd(packed, x, num_actions)
    jax.block_until_ready(q_values)

    assert q_values.shape == (batch, num_actions), q_values.shape
    assert q_values.dtype == jnp.float32

    # Verify against the pure-JAX f32 reference (bf16 kernel tolerance).
    q_ref = ref_forward(params, x)
    max_err = float(jnp.max(jnp.abs(q_values - q_ref)))
    assert max_err < 2e-2, f"max abs err {max_err}"

    print("KERNEL_OK")
</pallas_src>

<mosaic_0001>
module attributes {stable_mosaic.version = 11 : i64} {
  func.func @_gemm_bias_kernel(%arg0: i32, %arg1: i32, %arg2: i32, %arg3: memref<98x256xbf16, #tpu.memory_space<vmem>>, %arg4: memref<256x32xbf16, #tpu.memory_space<vmem>>, %arg5: memref<1x32xf32, #tpu.memory_space<vmem>>, %arg6: memref<98x32xbf16, #tpu.memory_space<vmem>>, %arg7: memref<98x32xf32, #tpu.memory_space<vmem>>) attributes {dimension_semantics = [#tpu.dimension_semantics<parallel>, #tpu.dimension_semantics<parallel>, #tpu.dimension_semantics<arbitrary>], iteration_bounds = array<i64: 1, 1, 1>, scalar_prefetch = 0 : i64, scratch_operands = 1 : i64, tpu.core_type = #tpu.core_type<tc>, window_params = [{transform_indices = @transform_0, window_bounds = array<i64: 98, 256>}, {transform_indices = @transform_1, window_bounds = array<i64: 256, 32>}, {transform_indices = @transform_2, window_bounds = array<i64: 1, 32>}, {transform_indices = @transform_3, window_bounds = array<i64: 98, 32>}]} {
    %c0_i32 = arith.constant 0 : i32
    %0 = arith.cmpi eq, %arg2, %c0_i32 : i32
    %1 = arith.extui %0 : i1 to i32
    %c0_i32_0 = arith.constant 0 : i32
    %2 = arith.cmpi ne, %1, %c0_i32_0 : i32
    scf.if %2 {
      %cst_10 = arith.constant 0.000000e+00 : f32
      %12 = vector.broadcast %cst_10 : f32 to vector<98x32xf32>
      %c0_11 = arith.constant 0 : index
      %c0_12 = arith.constant 0 : index
      %13 = vector.load %arg7[%c0_11, %c0_12] : memref<98x32xf32, #tpu.memory_space<vmem>>, vector<98x32xf32>
      tpu.vector_store %arg7[%c0_11, %c0_12], %12 {strides = array<i32>} : memref<98x32xf32, #tpu.memory_space<vmem>>, vector<98x32xf32>,
    } else {
    }
    %c0 = arith.constant 0 : index
    %c0_1 = arith.constant 0 : index
    %3 = vector.load %arg7[%c0, %c0_1] : memref<98x32xf32, #tpu.memory_space<vmem>>, vector<98x32xf32>
    %c0_2 = arith.constant 0 : index
    %c0_3 = arith.constant 0 : index
    %4 = vector.load %arg3[%c0_2, %c0_3] : memref<98x256xbf16, #tpu.memory_space<vmem>>, vector<98x256xbf16>
    %c0_4 = arith.constant 0 : index
    %c0_5 = arith.constant 0 : index
    %5 = vector.load %arg4[%c0_4, %c0_5] : memref<256x32xbf16, #tpu.memory_space<vmem>>, vector<256x32xbf16>
    %cst = arith.constant dense<0.000000e+00> : vector<98x32xf32>
    %6 = tpu.matmul %4, %5, %cst {dimension_numbers = #tpu.dot_dimension_numbers<[1], [0], [0], [1], [0, 0, 1, 1], [], []>} : vector<98x256xbf16>, vector<256x32xbf16>, vector<98x32xf32> -> vector<98x32xf32>
    %7 = arith.addf %3, %6 : vector<98x32xf32>
    %c0_6 = arith.constant 0 : index
    %c0_7 = arith.constant 0 : index
    %8 = vector.load %arg7[%c0_6, %c0_7] : memref<98x32xf32, #tpu.memory_space<vmem>>, vector<98x32xf32>
    tpu.vector_store %arg7[%c0_6, %c0_7], %7 {strides = array<i32>} : memref<98x32xf32, #tpu.memory_space<vmem>>, vector<98x32xf32>,
    %c0_i32_8 = arith.constant 0 : i32
    %9 = arith.cmpi eq, %arg2, %c0_i32_8 : i32
    %10 = arith.extui %9 : i1 to i32
    %c0_i32_9 = arith.constant 0 : i32
    %11 = arith.cmpi ne, %10, %c0_i32_9 : i32
    scf.if %11 {
      %c0_10 = arith.constant 0 : index
      %c0_11 = arith.constant 0 : index
      %12 = vector.load %arg7[%c0_10, %c0_11] : memref<98x32xf32, #tpu.memory_space<vmem>>, vector<98x32xf32>
      %c0_12 = arith.constant 0 : index
      %c0_13 = arith.constant 0 : index
      %13 = vector.load %arg5[%c0_12, %c0_13] : memref<1x32xf32, #tpu.memory_space<vmem>>, vector<1x32xf32>
      %14 = vector.broadcast %13 : vector<1x32xf32> to vector<98x32xf32>
      %15 = arith.addf %12, %14 : vector<98x32xf32>
      %cst_14 = arith.constant 0.000000e+00 : f32
      %16 = vector.broadcast %cst_14 : f32 to vector<98x32xf32>
      %17 = arith.maximumf %15, %16 : vector<98x32xf32>
      %18 = arith.truncf %17 : vector<98x32xf32> to vector<98x32xbf16>
      %c0_15 = arith.constant 0 : index
      %c0_16 = arith.constant 0 : index
      %19 = vector.load %arg6[%c0_15, %c0_16] : memref<98x32xbf16, #tpu.memory_space<vmem>>, vector<98x32xbf16>
      tpu.vector_store %arg6[%c0_15, %c0_16], %18 {strides = array<i32>} : memref<98x32xbf16, #tpu.memory_space<vmem>>, vector<98x32xbf16>,
    } else {
    }
    return
  }
  func.func @transform_0(%arg0: i32, %arg1: i32, %arg2: i32) -> (i32, i32) {
    %c0_i32 = arith.constant 0 : i32
    return %arg0, %arg2 : i32, i32
  }
  func.func @transform_1(%arg0: i32, %arg1: i32, %arg2: i32) -> (i32, i32) {
    %c0_i32 = arith.constant 0 : i32
    return %arg2, %arg1 : i32, i32
  }
  func.func @transform_2(%arg0: i32, %arg1: i32, %arg2: i32) -> (i32, i32) {
    %c0_i32 = arith.constant 0 : i32
    %c0_i32_0 = arith.constant 0 : i32
    return %c0_i32, %arg1 : i32, i32
  }
  func.func @transform_3(%arg0: i32, %arg1: i32, %arg2: i32) -> (i32, i32) {
    %c0_i32 = arith.constant 0 : i32
    return %arg0, %arg1 : i32, i32
  }
}

module attributes {stable_mosaic.version = 11 : i64} {
  func.func @_gemm_bias_kernel(%arg0: i32, %arg1: i32, %arg2: i32, %arg3: memref<8x512xbf16, #tpu.memory_space<vmem>>, %arg4: memref<512x64xbf16, #tpu.memory_space<vmem>>, %arg5: memref<1x64xf32, #tpu.memory_space<vmem>>, %arg6: memref<8x64xbf16, #tpu.memory_space<vmem>>, %arg7: memref<8x64xf32, #tpu.memory_space<vmem>>) attributes {dimension_semantics = [#tpu.dimension_semantics<parallel>, #tpu.dimension_semantics<parallel>, #tpu.dimension_semantics<arbitrary>], iteration_bounds = array<i64: 1, 1, 1>, scalar_prefetch = 0 : i64, scratch_operands = 1 : i64, tpu.core_type = #tpu.core_type<tc>, window_params = [{transform_indices = @transform_0, window_bounds = array<i64: 8, 512>}, {transform_indices = @transform_1, window_bounds = array<i64: 512, 64>}, {transform_indices = @transform_2, window_bounds = array<i64: 1, 64>}, {transform_indices = @transform_3, window_bounds = array<i64: 8, 64>}]} {
    %c0_i32 = arith.constant 0 : i32
    %0 = arith.cmpi eq, %arg2, %c0_i32 : i32
    %1 = arith.extui %0 : i1 to i32
    %c0_i32_0 = arith.constant 0 : i32
    %2 = arith.cmpi ne, %1, %c0_i32_0 : i32
    scf.if %2 {
      %cst_10 = arith.constant 0.000000e+00 : f32
      %12 = vector.broadcast %cst_10 : f32 to vector<8x64xf32>
      %c0_11 = arith.constant 0 : index
      %c0_12 = arith.constant 0 : index
      %13 = vector.load %arg7[%c0_11, %c0_12] : memref<8x64xf32, #tpu.memory_space<vmem>>, vector<8x64xf32>
      tpu.vector_store %arg7[%c0_11, %c0_12], %12 {strides = array<i32>} : memref<8x64xf32, #tpu.memory_space<vmem>>, vector<8x64xf32>,
    } else {
    }
    %c0 = arith.constant 0 : index
    %c0_1 = arith.constant 0 : index
    %3 = vector.load %arg7[%c0, %c0_1] : memref<8x64xf32, #tpu.memory_space<vmem>>, vector<8x64xf32>
    %c0_2 = arith.constant 0 : index
    %c0_3 = arith.constant 0 : index
    %4 = vector.load %arg3[%c0_2, %c0_3] : memref<8x512xbf16, #tpu.memory_space<vmem>>, vector<8x512xbf16>
    %c0_4 = arith.constant 0 : index
    %c0_5 = arith.constant 0 : index
    %5 = vector.load %arg4[%c0_4, %c0_5] : memref<512x64xbf16, #tpu.memory_space<vmem>>, vector<512x64xbf16>
    %cst = arith.constant dense<0.000000e+00> : vector<8x64xf32>
    %6 = tpu.matmul %4, %5, %cst {dimension_numbers = #tpu.dot_dimension_numbers<[1], [0], [0], [1], [0, 0, 1, 1], [], []>} : vector<8x512xbf16>, vector<512x64xbf16>, vector<8x64xf32> -> vector<8x64xf32>
    %7 = arith.addf %3, %6 : vector<8x64xf32>
    %c0_6 = arith.constant 0 : index
    %c0_7 = arith.constant 0 : index
    %8 = vector.load %arg7[%c0_6, %c0_7] : memref<8x64xf32, #tpu.memory_space<vmem>>, vector<8x64xf32>
    tpu.vector_store %arg7[%c0_6, %c0_7], %7 {strides = array<i32>} : memref<8x64xf32, #tpu.memory_space<vmem>>, vector<8x64xf32>,
    %c0_i32_8 = arith.constant 0 : i32
    %9 = arith.cmpi eq, %arg2, %c0_i32_8 : i32
    %10 = arith.extui %9 : i1 to i32
    %c0_i32_9 = arith.constant 0 : i32
    %11 = arith.cmpi ne, %10, %c0_i32_9 : i32
    scf.if %11 {
      %c0_10 = arith.constant 0 : index
      %c0_11 = arith.constant 0 : index
      %12 = vector.load %arg7[%c0_10, %c0_11] : memref<8x64xf32, #tpu.memory_space<vmem>>, vector<8x64xf32>
      %c0_12 = arith.constant 0 : index
      %c0_13 = arith.constant 0 : index
      %13 = vector.load %arg5[%c0_12, %c0_13] : memref<1x64xf32, #tpu.memory_space<vmem>>, vector<1x64xf32>
      %14 = vector.broadcast %13 : vector<1x64xf32> to vector<8x64xf32>
      %15 = arith.addf %12, %14 : vector<8x64xf32>
      %cst_14 = arith.constant 0.000000e+00 : f32
      %16 = vector.broadcast %cst_14 : f32 to vector<8x64xf32>
      %17 = arith.maximumf %15, %16 : vector<8x64xf32>
      %18 = arith.truncf %17 : vector<8x64xf32> to vector<8x64xbf16>
      %c0_15 = arith.constant 0 : index
      %c0_16 = arith.constant 0 : index
      %19 = vector.load %arg6[%c0_15, %c0_16] : memref<8x64xbf16, #tpu.memory_space<vmem>>, vector<8x64xbf16>
      tpu.vector_store %arg6[%c0_15, %c0_16], %18 {strides = array<i32>} : memref<8x64xbf16, #tpu.memory_space<vmem>>, vector<8x64xbf16>,
    } else {
    }
    return
  }
  func.func @transform_0(%arg0: i32, %arg1: i32, %arg2: i32) -> (i32, i32) {
    %c0_i32 = arith.constant 0 : i32
    return %arg0, %arg2 : i32, i32
  }
  func.func @transform_1(%arg0: i32, %arg1: i32, %arg2: i32) -> (i32, i32) {
    %c0_i32 = arith.constant 0 : i32
    return %arg2, %arg1 : i32, i32
  }
  func.func @transform_2(%arg0: i32, %arg1: i32, %arg2: i32) -> (i32, i32) {
    %c0_i32 = arith.constant 0 : i32
    %c0_i32_0 = arith.constant 0 : i32
    return %c0_i32, %arg1 : i32, i32
  }
  func.func @transform_3(%arg0: i32, %arg1: i32, %arg2: i32) -> (i32, i32) {
    %c0_i32 = arith.constant 0 : i32
    return %arg0, %arg1 : i32, i32
  }
}

module attributes {stable_mosaic.version = 11 : i64} {
  func.func @_gemm_bias_kernel(%arg0: i32, %arg1: i32, %arg2: i32, %arg3: memref<2x256xbf16, #tpu.memory_space<vmem>>, %arg4: memref<256x64xbf16, #tpu.memory_space<vmem>>, %arg5: memref<1x64xf32, #tpu.memory_space<vmem>>, %arg6: memref<2x64xbf16, #tpu.memory_space<vmem>>, %arg7: memref<2x64xf32, #tpu.memory_space<vmem>>) attributes {dimension_semantics = [#tpu.dimension_semantics<parallel>, #tpu.dimension_semantics<parallel>, #tpu.dimension_semantics<arbitrary>], iteration_bounds = array<i64: 1, 1, 1>, scalar_prefetch = 0 : i64, scratch_operands = 1 : i64, tpu.core_type = #tpu.core_type<tc>, window_params = [{transform_indices = @transform_0, window_bounds = array<i64: 2, 256>}, {transform_indices = @transform_1, window_bounds = array<i64: 256, 64>}, {transform_indices = @transform_2, window_bounds = array<i64: 1, 64>}, {transform_indices = @transform_3, window_bounds = array<i64: 2, 64>}]} {
    %c0_i32 = arith.constant 0 : i32
    %0 = arith.cmpi eq, %arg2, %c0_i32 : i32
    %1 = arith.extui %0 : i1 to i32
    %c0_i32_0 = arith.constant 0 : i32
    %2 = arith.cmpi ne, %1, %c0_i32_0 : i32
    scf.if %2 {
      %cst_10 = arith.constant 0.000000e+00 : f32
      %12 = vector.broadcast %cst_10 : f32 to vector<2x64xf32>
      %c0_11 = arith.constant 0 : index
      %c0_12 = arith.constant 0 : index
      %13 = vector.load %arg7[%c0_11, %c0_12] : memref<2x64xf32, #tpu.memory_space<vmem>>, vector<2x64xf32>
      tpu.vector_store %arg7[%c0_11, %c0_12], %12 {strides = array<i32>} : memref<2x64xf32, #tpu.memory_space<vmem>>, vector<2x64xf32>,
    } else {
    }
    %c0 = arith.constant 0 : index
    %c0_1 = arith.constant 0 : index
    %3 = vector.load %arg7[%c0, %c0_1] : memref<2x64xf32, #tpu.memory_space<vmem>>, vector<2x64xf32>
    %c0_2 = arith.constant 0 : index
    %c0_3 = arith.constant 0 : index
    %4 = vector.load %arg3[%c0_2, %c0_3] : memref<2x256xbf16, #tpu.memory_space<vmem>>, vector<2x256xbf16>
    %c0_4 = arith.constant 0 : index
    %c0_5 = arith.constant 0 : index
    %5 = vector.load %arg4[%c0_4, %c0_5] : memref<256x64xbf16, #tpu.memory_space<vmem>>, vector<256x64xbf16>
    %cst = arith.constant dense<0.000000e+00> : vector<2x64xf32>
    %6 = tpu.matmul %4, %5, %cst {dimension_numbers = #tpu.dot_dimension_numbers<[1], [0], [0], [1], [0, 0, 1, 1], [], []>} : vector<2x256xbf16>, vector<256x64xbf16>, vector<2x64xf32> -> vector<2x64xf32>
    %7 = arith.addf %3, %6 : vector<2x64xf32>
    %c0_6 = arith.constant 0 : index
    %c0_7 = arith.constant 0 : index
    %8 = vector.load %arg7[%c0_6, %c0_7] : memref<2x64xf32, #tpu.memory_space<vmem>>, vector<2x64xf32>
    tpu.vector_store %arg7[%c0_6, %c0_7], %7 {strides = array<i32>} : memref<2x64xf32, #tpu.memory_space<vmem>>, vector<2x64xf32>,
    %c0_i32_8 = arith.constant 0 : i32
    %9 = arith.cmpi eq, %arg2, %c0_i32_8 : i32
    %10 = arith.extui %9 : i1 to i32
    %c0_i32_9 = arith.constant 0 : i32
    %11 = arith.cmpi ne, %10, %c0_i32_9 : i32
    scf.if %11 {
      %c0_10 = arith.constant 0 : index
      %c0_11 = arith.constant 0 : index
      %12 = vector.load %arg7[%c0_10, %c0_11] : memref<2x64xf32, #tpu.memory_space<vmem>>, vector<2x64xf32>
      %c0_12 = arith.constant 0 : index
      %c0_13 = arith.constant 0 : index
      %13 = vector.load %arg5[%c0_12, %c0_13] : memref<1x64xf32, #tpu.memory_space<vmem>>, vector<1x64xf32>
      %14 = vector.broadcast %13 : vector<1x64xf32> to vector<2x64xf32>
      %15 = arith.addf %12, %14 : vector<2x64xf32>
      %cst_14 = arith.constant 0.000000e+00 : f32
      %16 = vector.broadcast %cst_14 : f32 to vector<2x64xf32>
      %17 = arith.maximumf %15, %16 : vector<2x64xf32>
      %18 = arith.truncf %17 : vector<2x64xf32> to vector<2x64xbf16>
      %c0_15 = arith.constant 0 : index
      %c0_16 = arith.constant 0 : index
      %19 = vector.load %arg6[%c0_15, %c0_16] : memref<2x64xbf16, #tpu.memory_space<vmem>>, vector<2x64xbf16>
      tpu.vector_store %arg6[%c0_15, %c0_16], %18 {strides = array<i32>} : memref<2x64xbf16, #tpu.memory_space<vmem>>, vector<2x64xbf16>,
    } else {
    }
    return
  }
  func.func @transform_0(%arg0: i32, %arg1: i32, %arg2: i32) -> (i32, i32) {
    %c0_i32 = arith.constant 0 : i32
    return %arg0, %arg2 : i32, i32
  }
  func.func @transform_1(%arg0: i32, %arg1: i32, %arg2: i32) -> (i32, i32) {
    %c0_i32 = arith.constant 0 : i32
    return %arg2, %arg1 : i32, i32
  }
  func.func @transform_2(%arg0: i32, %arg1: i32, %arg2: i32) -> (i32, i32) {
    %c0_i32 = arith.constant 0 : i32
    %c0_i32_0 = arith.constant 0 : i32
    return %c0_i32, %arg1 : i32, i32
  }
  func.func @transform_3(%arg0: i32, %arg1: i32, %arg2: i32) -> (i32, i32) {
    %c0_i32 = arith.constant 0 : i32
    return %arg0, %arg1 : i32, i32
  }
}

module attributes {stable_mosaic.version = 11 : i64} {
  func.func @_fc_head_kernel(%arg0: i32, %arg1: i32, %arg2: memref<2x64xbf16, #tpu.memory_space<vmem>>, %arg3: memref<64x512xbf16, #tpu.memory_space<vmem>>, %arg4: memref<1x512xf32, #tpu.memory_space<vmem>>, %arg5: memref<512x128xbf16, #tpu.memory_space<vmem>>, %arg6: memref<1x128xf32, #tpu.memory_space<vmem>>, %arg7: memref<2x128xf32, #tpu.memory_space<vmem>>, %arg8: memref<2x512xf32, #tpu.memory_space<vmem>>) attributes {dimension_semantics = [#tpu.dimension_semantics<parallel>, #tpu.dimension_semantics<arbitrary>], iteration_bounds = array<i64: 1, 1>, scalar_prefetch = 0 : i64, scratch_operands = 1 : i64, tpu.core_type = #tpu.core_type<tc>, window_params = [{transform_indices = @transform_0, window_bounds = array<i64: 2, 64>}, {transform_indices = @transform_1, window_bounds = array<i64: 64, 512>}, {pipeline_mode = #tpu.pipeline_mode<synchronous>, transform_indices = @transform_2, window_bounds = array<i64: 1, 512>}, {pipeline_mode = #tpu.pipeline_mode<synchronous>, transform_indices = @transform_3, window_bounds = array<i64: 512, 128>}, {pipeline_mode = #tpu.pipeline_mode<synchronous>, transform_indices = @transform_4, window_bounds = array<i64: 1, 128>}, {transform_indices = @transform_5, window_bounds = array<i64: 2, 128>}]} {
    %c0_i32 = arith.constant 0 : i32
    %0 = arith.cmpi eq, %arg1, %c0_i32 : i32
    %1 = arith.extui %0 : i1 to i32
    %c0_i32_0 = arith.constant 0 : i32
    %2 = arith.cmpi ne, %1, %c0_i32_0 : i32
    scf.if %2 {
      %cst_10 = arith.constant 0.000000e+00 : f32
      %12 = vector.broadcast %cst_10 : f32 to vector<2x512xf32>
      %c0_11 = arith.constant 0 : index
      %c0_12 = arith.constant 0 : index
      %13 = vector.load %arg8[%c0_11, %c0_12] : memref<2x512xf32, #tpu.memory_space<vmem>>, vector<2x512xf32>
      tpu.vector_store %arg8[%c0_11, %c0_12], %12 {strides = array<i32>} : memref<2x512xf32, #tpu.memory_space<vmem>>, vector<2x512xf32>,
    } else {
    }
    %c0 = arith.constant 0 : index
    %c0_1 = arith.constant 0 : index
    %3 = vector.load %arg8[%c0, %c0_1] : memref<2x512xf32, #tpu.memory_space<vmem>>, vector<2x512xf32>
    %c0_2 = arith.constant 0 : index
    %c0_3 = arith.constant 0 : index
    %4 = vector.load %arg2[%c0_2, %c0_3] : memref<2x64xbf16, #tpu.memory_space<vmem>>, vector<2x64xbf16>
    %c0_4 = arith.constant 0 : index
    %c0_5 = arith.constant 0 : index
    %5 = vector.load %arg3[%c0_4, %c0_5] : memref<64x512xbf16, #tpu.memory_space<vmem>>, vector<64x512xbf16>
    %cst = arith.constant dense<0.000000e+00> : vector<2x512xf32>
    %6 = tpu.matmul %4, %5, %cst {dimension_numbers = #tpu.dot_dimension_numbers<[1], [0], [0], [1], [0, 0, 1, 1], [], []>} : vector<2x64xbf16>, vector<64x512xbf16>, vector<2x512xf32> -> vector<2x512xf32>
    %7 = arith.addf %3, %6 : vector<2x512xf32>
    %c0_6 = arith.constant 0 : index
    %c0_7 = arith.constant 0 : index
    %8 = vector.load %arg8[%c0_6, %c0_7] : memref<2x512xf32, #tpu.memory_space<vmem>>, vector<2x512xf32>
    tpu.vector_store %arg8[%c0_6, %c0_7], %7 {strides = array<i32>} : memref<2x512xf32, #tpu.memory_space<vmem>>, vector<2x512xf32>,
    %c0_i32_8 = arith.constant 0 : i32
    %9 = arith.cmpi eq, %arg1, %c0_i32_8 : i32
    %10 = arith.extui %9 : i1 to i32
    %c0_i32_9 = arith.constant 0 : i32
    %11 = arith.cmpi ne, %10, %c0_i32_9 : i32
    scf.if %11 {
      %c0_10 = arith.constant 0 : index
      %c0_11 = arith.constant 0 : index
      %12 = vector.load %arg8[%c0_10, %c0_11] : memref<2x512xf32, #tpu.memory_space<vmem>>, vector<2x512xf32>
      %c0_12 = arith.constant 0 : index
      %c0_13 = arith.constant 0 : index
      %13 = vector.load %arg4[%c0_12, %c0_13] : memref<1x512xf32, #tpu.memory_space<vmem>>, vector<1x512xf32>
      %14 = vector.broadcast %13 : vector<1x512xf32> to vector<2x512xf32>
      %15 = arith.addf %12, %14 : vector<2x512xf32>
      %cst_14 = arith.constant 0.000000e+00 : f32
      %16 = vector.broadcast %cst_14 : f32 to vector<2x512xf32>
      %17 = arith.maximumf %15, %16 : vector<2x512xf32>
      %18 = arith.truncf %17 : vector<2x512xf32> to vector<2x512xbf16>
      %c0_15 = arith.constant 0 : index
      %c0_16 = arith.constant 0 : index
      %19 = vector.load %arg5[%c0_15, %c0_16] : memref<512x128xbf16, #tpu.memory_space<vmem>>, vector<512x128xbf16>
      %cst_17 = arith.constant dense<0.000000e+00> : vector<2x128xf32>
      %20 = tpu.matmul %18, %19, %cst_17 {dimension_numbers = #tpu.dot_dimension_numbers<[1], [0], [0], [1], [0, 0, 1, 1], [], []>} : vector<2x512xbf16>, vector<512x128xbf16>, vector<2x128xf32> -> vector<2x128xf32>
      %c0_18 = arith.constant 0 : index
      %c0_19 = arith.constant 0 : index
      %21 = vector.load %arg6[%c0_18, %c0_19] : memref<1x128xf32, #tpu.memory_space<vmem>>, vector<1x128xf32>
      %22 = vector.broadcast %21 : vector<1x128xf32> to vector<2x128xf32>
      %23 = arith.addf %20, %22 : vector<2x128xf32>
      %c0_20 = arith.constant 0 : index
      %c0_21 = arith.constant 0 : index
      %24 = vector.load %arg7[%c0_20, %c0_21] : memref<2x128xf32, #tpu.memory_space<vmem>>, vector<2x128xf32>
      tpu.vector_store %arg7[%c0_20, %c0_21], %23 {strides = array<i32>} : memref<2x128xf32, #tpu.memory_space<vmem>>, vector<2x128xf32>,
    } else {
    }
    return
  }
  func.func @transform_0(%arg0: i32, %arg1: i32) -> (i32, i32) {
    %c0_i32 = arith.constant 0 : i32
    return %arg0, %arg1 : i32, i32
  }
  func.func @transform_1(%arg0: i32, %arg1: i32) -> (i32, i32) {
    %c0_i32 = arith.constant 0 : i32
    %c0_i32_0 = arith.constant 0 : i32
    return %arg1, %c0_i32 : i32, i32
  }
  func.func @transform_2(%arg0: i32, %arg1: i32) -> (i32, i32) {
    %c0_i32 = arith.constant 0 : i32
    %c0_i32_0 = arith.constant 0 : i32
    %c0_i32_1 = arith.constant 0 : i32
    return %c0_i32, %c0_i32_0 : i32, i32
  }
  func.func @transform_3(%arg0: i32, %arg1: i32) -> (i32, i32) {
    %c0_i32 = arith.constant 0 : i32
    %c0_i32_0 = arith.constant 0 : i32
    %c0_i32_1 = arith.constant 0 : i32
    return %c0_i32, %c0_i32_0 : i32, i32
  }
  func.func @transform_4(%arg0: i32, %arg1: i32) -> (i32, i32) {
    %c0_i32 = arith.constant 0 : i32
    %c0_i32_0 = arith.constant 0 : i32
    %c0_i32_1 = arith.constant 0 : i32
    return %c0_i32, %c0_i32_0 : i32, i32
  }
  func.func @transform_5(%arg0: i32, %arg1: i32) -> (i32, i32) {
    %c0_i32 = arith.constant 0 : i32
    %c0_i32_0 = arith.constant 0 : i32
    return %arg0, %c0_i32 : i32, i32
  }
}

</mosaic_0001>

<llo_original>
// kernel: dqn_forward.4
$region0: #{dqn_forward.4}
  #allocation0 [shape = 'u32[]', space=smem, size = 0x4, offset = 0x4, fixed_abs, tag = 'smem constant byte address 0x4 - core index']
  #allocation1 [shape = 'u32[144,128]{1,0:T(1,128)}', space=vmem, size = 0x12000, scoped, tag = 'internal scratch']
  #allocation2 [shape = 'f32[98,32]{1,0:T(8,128)}', space=vmem, size = 0xd000, scoped, tag = 'scratch operand']
  %s0 = inlined_call_operand.vmem [shape: bf16[98,256], index: 0, kind: input, shape index: {}]
  %s1 = inlined_call_operand.vmem [shape: bf16[256,32], index: 1, kind: input, shape index: {}]
  %s2 = inlined_call_operand.vmem [shape: f32[1,32], index: 2, kind: input, shape index: {}]
  %s3 = inlined_call_operand.vmem [shape: bf16[98,32], index: 3, kind: output, shape index: {}]
  %s4 = sld [smem:[#allocation0]]
  $region30: #{dqn_forward.4} parent=0
    _
  %s6 = ssub.s32 1, %s4
  %s7 = scalar_select 0, %s6, %s4
  // Predicated region
  $region2: #{dqn_forward.4} parent=0 // pred_check
    _
  $region3: #{dqn_forward.4} parent=0 // pred_check_branch
    %9 = sbr.rel (0) target = $region5
  $region4: #{dqn_forward.4} parent=0 // pred_region
    _
  $region5: #{dqn_forward.4} parent=0 // pred_fallthru
    _
  // Predicated region
  $region6: #{dqn_forward.4} parent=0 // pred_check
    _
  $region7: #{dqn_forward.4} parent=0 // pred_check_branch
    %11 = sbr.rel (0) target = $region9
  $region8: #{dqn_forward.4} parent=0 // pred_region
    _
  $region9: #{dqn_forward.4} parent=0 // pred_fallthru
    _
  // Predicated region
  $region10: #{dqn_forward.4} parent=0 // pred_check
    _
  $region11: #{dqn_forward.4} parent=0 // pred_check_branch
    %13 = sbr.rel (0) target = $region13
  $region12: #{dqn_forward.4} parent=0 // pred_region
    _
  $region13: #{dqn_forward.4} parent=0 // pred_fallthru
    _
  %p15 = scmp.eq.s32.totalorder 0, 0
  // Predicated region
  $region14: #{dqn_forward.4} parent=0 // pred_check
    %p16 = pneg %p15
  $region15: #{dqn_forward.4} parent=0 // pred_check_branch
    %18 = sbr.rel (%p16) target = $region17
  $region16: #{dqn_forward.4} parent=0 // pred_region
    %vm19 = vcmask 261120
    %20 = vst.msk [vmem:[#allocation2] sm:$0xff] %vm19, 0.0
    %21 = vst.msk [vmem:[#allocation2 + $0x8] sm:$0xff] %vm19, 0.0
    %22 = vst.msk [vmem:[#allocation2 + $0x10] sm:$0xff] %vm19, 0.0
    %23 = vst.msk [vmem:[#allocation2 + $0x18] sm:$0xff] %vm19, 0.0
    %24 = vst.msk [vmem:[#allocation2 + $0x20] sm:$0xff] %vm19, 0.0
    %25 = vst.msk [vmem:[#allocation2 + $0x28] sm:$0xff] %vm19, 0.0
    %26 = vst.msk [vmem:[#allocation2 + $0x30] sm:$0xff] %vm19, 0.0
    %27 = vst.msk [vmem:[#allocation2 + $0x38] sm:$0xff] %vm19, 0.0
    %28 = vst.msk [vmem:[#allocation2 + $0x40] sm:$0xff] %vm19, 0.0
    %29 = vst.msk [vmem:[#allocation2 + $0x48] sm:$0xff] %vm19, 0.0
    %30 = vst.msk [vmem:[#allocation2 + $0x50] sm:$0xff] %vm19, 0.0
    %31 = vst.msk [vmem:[#allocation2 + $0x58] sm:$0xff] %vm19, 0.0
    %vm32 = vcmask 254976
    %33 = vst.msk [vmem:[#allocation2 + $0x60] sm:$0x3] %vm32, 0.0
  $region17: #{dqn_forward.4} parent=0 // pred_fallthru
    _
  %v34 = vld [vmem:[#allocation2] sm:$0xff]
  %v35 = vld [vmem:[#allocation2 + $0x8] sm:$0xff]
  %v36 = vld [vmem:[#allocation2 + $0x10] sm:$0xff]
  %v37 = vld [vmem:[#allocation2 + $0x18] sm:$0xff]
  %v38 = vld [vmem:[#allocation2 + $0x20] sm:$0xff]
  %v39 = vld [vmem:[#allocation2 + $0x28] sm:$0xff]
  %v40 = vld [vmem:[#allocation2 + $0x30] sm:$0xff]
  %v41 = vld [vmem:[#allocation2 + $0x38] sm:$0xff]
  %v42 = vld [vmem:[#allocation2 + $0x40] sm:$0xff]
  %v43 = vld [vmem:[#allocation2 + $0x48] sm:$0xff]
  %v44 = vld [vmem:[#allocation2 + $0x50] sm:$0xff]
  %v45 = vld [vmem:[#allocation2 + $0x58] sm:$0xff]
  %v46 = vld [vmem:[#allocation2 + $0x60] sm:$0x3]
  %v47 = vld [vmem:[%s0] sm:$0xff]
  %v48 = vld [vmem:[%s0 + $0x8] sm:$0xff]
  %v49 = vld [vmem:[%s0 + $0x10] sm:$0xff]
  %v50 = vld [vmem:[%s0 + $0x18] sm:$0xff]
  %v51 = vld [vmem:[%s0 + $0x20] sm:$0xff]
  %v52 = vld [vmem:[%s0 + $0x28] sm:$0xff]
  %v53 = vld [vmem:[%s0 + $0x30] sm:$0xff]
  %v54 = vld [vmem:[%s0 + $0x38] sm:$0xff]
  %v55 = vld [vmem:[%s0 + $0x40] sm:$0xff]
  %v56 = vld [vmem:[%s0 + $0x48] sm:$0xff]
  %v57 = vld [vmem:[%s0 + $0x50] sm:$0xff]
  %v58 = vld [vmem:[%s0 + $0x58] sm:$0xff]
  %v59 = vld [vmem:[%s0 + $0x60] sm:$0x11]
  %v60 = vld [vmem:[%s1] sm:$0xf]
  %v61 = vld [vmem:[%s1 + $0x4] sm:$0xf]
  %v62 = vld [vmem:[%s1 + $0x8] sm:$0xf]
  %v63 = vld [vmem:[%s1 + $0xc] sm:$0xf]
  %v64 = vld [vmem:[%s1 + $0x10] sm:$0xf]
  %v65 = vld [vmem:[%s1 + $0x14] sm:$0xf]
  %v66 = vld [vmem:[%s1 + $0x18] sm:$0xf]
  %v67 = vld [vmem:[%s1 + $0x1c] sm:$0xf]
  %v68 = vld [vmem:[%s1 + $0x20] sm:$0xf]
  %v69 = vld [vmem:[%s1 + $0x24] sm:$0xf]
  %v70 = vld [vmem:[%s1 + $0x28] sm:$0xf]
  %v71 = vld [vmem:[%s1 + $0x2c] sm:$0xf]
  %v72 = vld [vmem:[%s1 + $0x30] sm:$0xf]
  %v73 = vld [vmem:[%s1 + $0x34] sm:$0xf]
  %v74 = vld [vmem:[%s1 + $0x38] sm:$0xf]
  %v75 = vld [vmem:[%s1 + $0x3c] sm:$0xf]
  %v76 = vld [vmem:[%s1 + $0x40] sm:$0xf]
  %v77 = vld [vmem:[%s1 + $0x44] sm:$0xf]
  %v78 = vld [vmem:[%s1 + $0x48] sm:$0xf]
  %v79 = vld [vmem:[%s1 + $0x4c] sm:$0xf]
  %v80 = vld [vmem:[%s1 + $0x50] sm:$0xf]
  %v81 = vld [vmem:[%s1 + $0x54] sm:$0xf]
  %v82 = vld [vmem:[%s1 + $0x58] sm:$0xf]
  %v83 = vld [vmem:[%s1 + $0x5c] sm:$0xf]
  %v84 = vld [vmem:[%s1 + $0x60] sm:$0xf]
  %v85 = vld [vmem:[%s1 + $0x64] sm:$0xf]
  %v86 = vld [vmem:[%s1 + $0x68] sm:$0xf]
  %v87 = vld [vmem:[%s1 + $0x6c] sm:$0xf]
  %v88 = vld [vmem:[%s1 + $0x70] sm:$0xf]
  %v89 = vld [vmem:[%s1 + $0x74] sm:$0xf]
  %v90 = vld [vmem:[%s1 + $0x78] sm:$0xf]
  %v91 = vld [vmem:[%s1 + $0x7c] sm:$0xf]
  %v105 = vunpack.c.l.b16 %v47
  %v106 = vunpack.c.h.b16 %v47
  %v107 = vunpack.c.l.b16 %v48
  %v108 = vunpack.c.h.b16 %v48
  %v109 = vunpack.c.l.b16 %v49
  %v110 = vunpack.c.h.b16 %v49
  %v111 = vunpack.c.l.b16 %v50
  %v112 = vunpack.c.h.b16 %v50
  %v113 = vunpack.c.l.b16 %v51
  %v114 = vunpack.c.h.b16 %v51
  %v115 = vunpack.c.l.b16 %v52
  %v116 = vunpack.c.h.b16 %v52
  %v117 = vunpack.c.l.b16 %v53
  %v118 = vunpack.c.h.b16 %v53
  %v119 = vunpack.c.l.b16 %v54
  %v120 = vunpack.c.h.b16 %v54
  %v121 = vunpack.c.l.b16 %v55
  %v122 = vunpack.c.h.b16 %v55
  %v123 = vunpack.c.l.b16 %v56
  %v124 = vunpack.c.h.b16 %v56
  %v125 = vunpack.c.l.b16 %v57
  %v126 = vunpack.c.h.b16 %v57
  %v127 = vunpack.c.l.b16 %v58
  %v128 = vunpack.c.h.b16 %v58
  %v129 = vunpack.c.l.b16 %v59
  %v130 = vunpack.c.h.b16 %v59
  %v131 = vpack.c.b16 %v107, %v105
  %v132 = vpack.c.b16 %v108, %v106
  %v133 = vpack.c.b16 %v111, %v109
  %v134 = vpack.c.b16 %v112, %v110
  %v135 = vpack.c.b16 %v115, %v113
  %v136 = vpack.c.b16 %v116, %v114
  %v137 = vpack.c.b16 %v119, %v117
  %v138 = vpack.c.b16 %v120, %v118
  %v139 = vpack.c.b16 %v123, %v121
  %v140 = vpack.c.b16 %v124, %v122
  %v141 = vpack.c.b16 %v127, %v125
  %v142 = vpack.c.b16 %v128, %v126
  %v143 = vpack.c.b16 %v129, %v129
  %v144 = vpack.c.b16 %v130, %v130
  %v191 = vunpack.c.l.b16 %v60
  %v192 = vunpack.c.l.b16 %v61
  %v193 = vunpack.c.l.b16 %v62
  %v194 = vunpack.c.l.b16 %v63
  %v195 = vunpack.c.l.b16 %v64
  %v196 = vunpack.c.l.b16 %v65
  %v197 = vunpack.c.l.b16 %v66
  %v198 = vunpack.c.l.b16 %v67
  %v199 = vunpack.c.l.b16 %v68
  %v200 = vunpack.c.l.b16 %v69
  %v201 = vunpack.c.l.b16 %v70
  %v202 = vunpack.c.l.b16 %v71
  %v203 = vunpack.c.l.b16 %v72
  %v204 = vunpack.c.l.b16 %v73
  %v205 = vunpack.c.l.b16 %v74
  %v206 = vunpack.c.l.b16 %v75
  %v207 = vunpack.c.l.b16 %v76
  %v208 = vunpack.c.l.b16 %v77
  %v209 = vunpack.c.l.b16 %v78
  %v210 = vunpack.c.l.b16 %v79
  %v211 = vunpack.c.l.b16 %v80
  %v212 = vunpack.c.l.b16 %v81
  %v213 = vunpack.c.l.b16 %v82
  %v214 = vunpack.c.l.b16 %v83
  %v215 = vunpack.c.l.b16 %v84
  %v216 = vunpack.c.l.b16 %v85
  %v217 = vunpack.c.l.b16 %v86
  %v218 = vunpack.c.l.b16 %v87
  %v219 = vunpack.c.l.b16 %v88
  %v220 = vunpack.c.l.b16 %v89
  %v221 = vunpack.c.l.b16 %v90
  %v222 = vunpack.c.l.b16 %v91
  %v223 = vpack.c.b16 %v192, %v191
  %v224 = vpack.c.b16 %v194, %v193
  %v225 = vpack.c.b16 %v196, %v195
  %v226 = vpack.c.b16 %v198, %v197
  %v227 = vpack.c.b16 %v200, %v199
  %v228 = vpack.c.b16 %v202, %v201
  %v229 = vpack.c.b16 %v204, %v203
  %v230 = vpack.c.b16 %v206, %v205
  %v231 = vpack.c.b16 %v208, %v207
  %v232 = vpack.c.b16 %v210, %v209
  %v233 = vpack.c.b16 %v212, %v211
  %v234 = vpack.c.b16 %v214, %v213
  %v235 = vpack.c.b16 %v216, %v215
  %v236 = vpack.c.b16 %v218, %v217
  %v237 = vpack.c.b16 %v220, %v219
  %v238 = vpack.c.b16 %v222, %v221
  %255 = vmatprep.subr.bf16.mxu0 0
  %256 = vmatpush1.bf16.msra.mxu0 %v223
  %257 = vmatprep.subr.bf16.mxu0 0
  %258 = vmatpush1.bf16.msra.mxu0 %v224
  %259 = vmatprep.subr.bf16.mxu0 0
  %260 = vmatpush1.bf16.msra.mxu0 %v225
  %261 = vmatprep.subr.bf16.mxu0 0
  %262 = vmatpush1.bf16.msra.mxu0 %v226
  %263 = vmatprep.subr.bf16.mxu0 0
  %264 = vmatpush1.bf16.msra.mxu0 %v227
  %265 = vmatprep.subr.bf16.mxu0 0
  %266 = vmatpush1.bf16.msra.mxu0 %v228
  %267 = vmatprep.subr.bf16.mxu0 0
  %268 = vmatpush1.bf16.msra.mxu0 %v229
  %269 = vmatprep.subr.bf16.mxu0 0
  %270 = vmatpush1.bf16.msra.mxu0 %v230
  %271 = vmatprep.subr.bf16.mxu0 0
  %272 = vmatpush1.bf16.msra.mxu0 %v231
  %273 = vmatprep.subr.bf16.mxu0 0
  %274 = vmatpush1.bf16.msra.mxu0 %v232
  %275 = vmatprep.subr.bf16.mxu0 0
  %276 = vmatpush1.bf16.msra.mxu0 %v233
  %277 = vmatprep.subr.bf16.mxu0 0
  %278 = vmatpush1.bf16.msra.mxu0 %v234
  %279 = vmatprep.subr.bf16.mxu0 0
  %280 = vmatpush1.bf16.msra.mxu0 %v235
  %281 = vmatprep.subr.bf16.mxu0 0
  %282 = vmatpush1.bf16.msra.mxu0 %v236
  %283 = vmatprep.subr.bf16.mxu0 0
  %284 = vmatpush1.bf16.msra.mxu0 %v237
  %285 = vmatprep.subr.bf16.mxu0 0
  %286 = vmatpush1.bf16.msra.mxu0 %v238
  %287 = vmatprep.mubr.bf16.mxu0 %v132
  %288 = vmatmul.mubr.bf16.gmra.mrb[0].mxu0 %v131
  %v289 = vpop.f32.mrb[0].mxu0
  %v290 = vadd.f32 0.0, %v289
  %v291 = vpop.f32.mrb[0].mxu0
  %v292 = vpop.f32.mrb[0].mxu0
  %v293 = vadd.f32 0.0, %v292
  %v294 = vpop.f32.mrb[0].mxu0
  %295 = vmatprep.mubr.bf16.mxu0 %v134
  %296 = vmatmul.mubr.bf16.gmra.mrb[0].mxu0 %v133
  %v297 = vpop.f32.mrb[0].mxu0
  %v298 = vadd.f32 0.0, %v297
  %v299 = vpop.f32.mrb[0].mxu0
  %v300 = vpop.f32.mrb[0].mxu0
  %v301 = vadd.f32 0.0, %v300
  %v302 = vpop.f32.mrb[0].mxu0
  %303 = vmatprep.mubr.bf16.mxu0 %v136
  %304 = vmatmul.mubr.bf16.gmra.mrb[0].mxu0 %v135
  %v305 = vpop.f32.mrb[0].mxu0
  %v306 = vadd.f32 0.0, %v305
  %v307 = vpop.f32.mrb[0].mxu0
  %v308 = vpop.f32.mrb[0].mxu0
  %v309 = vadd.f32 0.0, %v308
  %v310 = vpop.f32.mrb[0].mxu0
  %311 = vmatprep.mubr.bf16.mxu0 %v138
  %312 = vmatmul.mubr.bf16.gmra.mrb[0].mxu0 %v137
  %v313 = vpop.f32.mrb[0].mxu0
  %v314 = vadd.f32 0.0, %v313
  %v315 = vpop.f32.mrb[0].mxu0
  %v316 = vpop.f32.mrb[0].mxu0
  %v317 = vadd.f32 0.0, %v316
  %v318 = vpop.f32.mrb[0].mxu0
  %319 = vmatprep.mubr.bf16.mxu0 %v140
  %320 = vmatmul.mubr.bf16.gmra.mrb[0].mxu0 %v139
  %v321 = vpop.f32.mrb[0].mxu0
  %v322 = vadd.f32 0.0, %v321
  %v323 = vpop.f32.mrb[0].mxu0
  %v324 = vpop.f32.mrb[0].mxu0
  %v325 = vadd.f32 0.0, %v324
  %v326 = vpop.f32.mrb[0].mxu0
  %327 = vmatprep.mubr.bf16.mxu0 %v142
  %328 = vmatmul.mubr.bf16.gmra.mrb[0].mxu0 %v141
  %v329 = vpop.f32.mrb[0].mxu0
  %v330 = vadd.f32 0.0, %v329
  %v331 = vpop.f32.mrb[0].mxu0
  %v332 = vpop.f32.mrb[0].mxu0
  %v333 = vadd.f32 0.0, %v332
  %v334 = vpop.f32.mrb[0].mxu0
  %335 = vmatprep.mubr.bf16.mxu0 %v144
  %336 = vmatmul.mubr.bf16.gmra.mrb[0].mxu0 %v143
  %v337 = vpop.f32.mrb[0].mxu0
  %v338 = vadd.f32 0.0, %v337
  %v339 = vpop.f32.mrb[0].mxu0
  %v340 = vpop.f32.mrb[0].mxu0
  %v341 = vpop.f32.mrb[0].mxu0
  %342 = vdwg.mxu0
  %v343 = vadd.f32 %v34, %v290
  %v344 = vadd.f32 %v35, %v293
  %v345 = vadd.f32 %v36, %v298
  %v346 = vadd.f32 %v37, %v301
  %v347 = vadd.f32 %v38, %v306
  %v348 = vadd.f32 %v39, %v309
  %v349 = vadd.f32 %v40, %v314
  %v350 = vadd.f32 %v41, %v317
  %v351 = vadd.f32 %v42, %v322
  %v352 = vadd.f32 %v43, %v325
  %v353 = vadd.f32 %v44, %v330
  %v354 = vadd.f32 %v45, %v333
  %v355 = vadd.f32 %v46, %v338
  %vm356 = vcmask 261120
  %357 = vst.msk [vmem:[#allocation2] sm:$0xff] %vm356, %v343
  %358 = vst.msk [vmem:[#allocation2 + $0x8] sm:$0xff] %vm356, %v344
  %359 = vst.msk [vmem:[#allocation2 + $0x10] sm:$0xff] %vm356, %v345
  %360 = vst.msk [vmem:[#allocation2 + $0x18] sm:$0xff] %vm356, %v346
  %361 = vst.msk [vmem:[#allocation2 + $0x20] sm:$0xff] %vm356, %v347
  %362 = vst.msk [vmem:[#allocation2 + $0x28] sm:$0xff] %vm356, %v348
  %363 = vst.msk [vmem:[#allocation2 + $0x30] sm:$0xff] %vm356, %v349
  %364 = vst.msk [vmem:[#allocation2 + $0x38] sm:$0xff] %vm356, %v350
  %365 = vst.msk [vmem:[#allocation2 + $0x40] sm:$0xff] %vm356, %v351
  %366 = vst.msk [vmem:[#allocation2 + $0x48] sm:$0xff] %vm356, %v352
  %367 = vst.msk [vmem:[#allocation2 + $0x50] sm:$0xff] %vm356, %v353
  %368 = vst.msk [vmem:[#allocation2 + $0x58] sm:$0xff] %vm356, %v354
  %vm369 = vcmask 254976
  %370 = vst.msk [vmem:[#allocation2 + $0x60] sm:$0x3] %vm369, %v355
  // Predicated region
  $region18: #{dqn_forward.4} parent=0 // pred_check
    %p371 = pneg %p15
  $region19: #{dqn_forward.4} parent=0 // pred_check_branch
    %373 = sbr.rel (%p371) target = $region21
  $region20: #{dqn_forward.4} parent=0 // pred_region
    %v374 = vld [vmem:[#allocation2] sm:$0xff]
    %v375 = vld [vmem:[#allocation2 + $0x8] sm:$0xff]
    %v376 = vld [vmem:[#allocation2 + $0x10] sm:$0xff]
    %v377 = vld [vmem:[#allocation2 + $0x18] sm:$0xff]
    %v378 = vld [vmem:[#allocation2 + $0x20] sm:$0xff]
    %v379 = vld [vmem:[#allocation2 + $0x28] sm:$0xff]
    %v380 = vld [vmem:[#allocation2 + $0x30] sm:$0xff]
    %v381 = vld [vmem:[#allocation2 + $0x38] sm:$0xff]
    %v382 = vld [vmem:[#allocation2 + $0x40] sm:$0xff]
    %v383 = vld [vmem:[#allocation2 + $0x48] sm:$0xff]
    %v384 = vld [vmem:[#allocation2 + $0x50] sm:$0xff]
    %v385 = vld [vmem:[#allocation2 + $0x58] sm:$0xff]
    %v386 = vld [vmem:[#allocation2 + $0x60] sm:$0x3]
    %v387 = vld [vmem:[%s2] sm:$0x1]
    %v389 = vlaneseq
    %v390 = vshrl.u32 %v389, 7
    %v391 = vsub.s32 0, %v390
    %v392 = vrot.slane %v387, %v391
    %v394 = vadd.f32 %v374, %v392
    %v395 = vadd.f32 %v375, %v392
    %v396 = vadd.f32 %v376, %v392
    %v397 = vadd.f32 %v377, %v392
    %v398 = vadd.f32 %v378, %v392
    %v399 = vadd.f32 %v379, %v392
    %v400 = vadd.f32 %v380, %v392
    %v401 = vadd.f32 %v381, %v392
    %v402 = vadd.f32 %v382, %v392
    %v403 = vadd.f32 %v383, %v392
    %v404 = vadd.f32 %v384, %v392
    %v405 = vadd.f32 %v385, %v392
    %v406 = vadd.f32 %v386, %v392
    %v407 = vmax.f32 %v394, 0.0
    %v408 = vmax.f32 %v395, 0.0
    %v409 = vmax.f32 %v396, 0.0
    %v410 = vmax.f32 %v397, 0.0
    %v411 = vmax.f32 %v398, 0.0
    %v412 = vmax.f32 %v399, 0.0
    %v413 = vmax.f32 %v400, 0.0
    %v414 = vmax.f32 %v401, 0.0
    %v415 = vmax.f32 %v402, 0.0
    %v416 = vmax.f32 %v403, 0.0
    %v417 = vmax.f32 %v404, 0.0
    %v418 = vmax.f32 %v405, 0.0
    %v419 = vmax.f32 %v406, 0.0
    %v420 = vpack.c.bf16 %v408, %v407
    %v421 = vpack.c.bf16 %v410, %v409
    %v422 = vpack.c.bf16 %v412, %v411
    %v423 = vpack.c.bf16 %v414, %v413
    %v424 = vpack.c.bf16 %v416, %v415
    %v425 = vpack.c.bf16 %v418, %v417
    %v426 = vpack.c.bf16 %v419, %v419
    %v434 = vunpack.c.l.b16 %v420
    %v435 = vunpack.c.h.b16 %v420
    %v436 = vunpack.c.l.b16 %v421
    %v437 = vunpack.c.h.b16 %v421
    %v438 = vunpack.c.l.b16 %v422
    %v439 = vunpack.c.h.b16 %v422
    %v440 = vunpack.c.l.b16 %v423
    %v441 = vunpack.c.h.b16 %v423
    %v442 = vunpack.c.l.b16 %v424
    %v443 = vunpack.c.h.b16 %v424
    %v444 = vunpack.c.l.b16 %v425
    %v445 = vunpack.c.h.b16 %v425
    %v446 = vunpack.c.l.b16 %v426
    %v447 = vpack.c.b16 %v434, %v434
    %v448 = vpack.c.b16 %v435, %v435
    %v449 = vpack.c.b16 %v436, %v436
    %v450 = vpack.c.b16 %v437, %v437
    %v451 = vpack.c.b16 %v438, %v438
    %v452 = vpack.c.b16 %v439, %v439
    %v453 = vpack.c.b16 %v440, %v440
    %v454 = vpack.c.b16 %v441, %v441
    %v455 = vpack.c.b16 %v442, %v442
    %v456 = vpack.c.b16 %v443, %v443
    %v457 = vpack.c.b16 %v444, %v444
    %v458 = vpack.c.b16 %v445, %v445
    %v459 = vpack.c.b16 %v446, %v446
    %vm473 = vcmask 257024
    %474 = vst.msk [vmem:[%s3] sm:$0xf] %vm473, %v447
    %475 = vst.msk [vmem:[%s3 + $0x4] sm:$0xf] %vm473, %v448
    %476 = vst.msk [vmem:[%s3 + $0x8] sm:$0xf] %vm473, %v449
    %477 = vst.msk [vmem:[%s3 + $0xc] sm:$0xf] %vm473, %v450
    %478 = vst.msk [vmem:[%s3 + $0x10] sm:$0xf] %vm473, %v451
    %479 = vst.msk [vmem:[%s3 + $0x14] sm:$0xf] %vm473, %v452
    %480 = vst.msk [vmem:[%s3 + $0x18] sm:$0xf] %vm473, %v453
    %481 = vst.msk [vmem:[%s3 + $0x1c] sm:$0xf] %vm473, %v454
    %482 = vst.msk [vmem:[%s3 + $0x20] sm:$0xf] %vm473, %v455
    %483 = vst.msk [vmem:[%s3 + $0x24] sm:$0xf] %vm473, %v456
    %484 = vst.msk [vmem:[%s3 + $0x28] sm:$0xf] %vm473, %v457
    %485 = vst.msk [vmem:[%s3 + $0x2c] sm:$0xf] %vm473, %v458
    %vm486 = vcmask 253952
    %487 = vst.msk [vmem:[%s3 + $0x30] sm:$0x1] %vm486, %v459
  $region21: #{dqn_forward.4} parent=0 // pred_fallthru
    _
  // Predicated region
  $region22: #{dqn_forward.4} parent=0 // pred_check
    _
  $region23: #{dqn_forward.4} parent=0 // pred_check_branch
    %489 = sbr.rel (0) target = $region25
  $region24: #{dqn_forward.4} parent=0 // pred_region
    _
  $region25: #{dqn_forward.4} parent=0 // pred_fallthru
    _
  // Predicated region
  $region26: #{dqn_forward.4} parent=0 // pred_check
    _
  $region27: #{dqn_forward.4} parent=0 // pred_check_branch
    %491 = sbr.rel (0) target = $region29
  $region28: #{dqn_forward.4} parent=0 // pred_region
    _
  $region29: #{dqn_forward.4} parent=0 // pred_fallthru
    _

// kernel: dqn_forward.5
$region0: #{dqn_forward.5}
  #allocation0 [shape = 'u32[]', space=smem, size = 0x4, offset = 0x4, fixed_abs, tag = 'smem constant byte address 0x4 - core index']
  #allocation1 [shape = 'u32[144,128]{1,0:T(1,128)}', space=vmem, size = 0x12000, scoped, tag = 'internal scratch']
  #allocation2 [shape = 'f32[8,64]{1,0:T(8,128)}', space=vmem, size = 0x1000, scoped, tag = 'scratch operand']
  %s0 = inlined_call_operand.vmem [shape: bf16[8,512], index: 0, kind: input, shape index: {}]
  %s1 = inlined_call_operand.vmem [shape: bf16[512,64], index: 1, kind: input, shape index: {}]
  %s2 = inlined_call_operand.vmem [shape: f32[1,64], index: 2, kind: input, shape index: {}]
  %s3 = inlined_call_operand.vmem [shape: bf16[8,64], index: 3, kind: output, shape index: {}]
  %s4 = sld [smem:[#allocation0]]
  $region30: #{dqn_forward.5} parent=0
    _
  %s6 = ssub.s32 1, %s4
  %s7 = scalar_select 0, %s6, %s4
  // Predicated region
  $region2: #{dqn_forward.5} parent=0 // pred_check
    _
  $region3: #{dqn_forward.5} parent=0 // pred_check_branch
    %9 = sbr.rel (0) target = $region5
  $region4: #{dqn_forward.5} parent=0 // pred_region
    _
  $region5: #{dqn_forward.5} parent=0 // pred_fallthru
    _
  // Predicated region
  $region6: #{dqn_forward.5} parent=0 // pred_check
    _
  $region7: #{dqn_forward.5} parent=0 // pred_check_branch
    %11 = sbr.rel (0) target = $region9
  $region8: #{dqn_forward.5} parent=0 // pred_region
    _
  $region9: #{dqn_forward.5} parent=0 // pred_fallthru
    _
  // Predicated region
  $region10: #{dqn_forward.5} parent=0 // pred_check
    _
  $region11: #{dqn_forward.5} parent=0 // pred_check_branch
    %13 = sbr.rel (0) target = $region13
  $region12: #{dqn_forward.5} parent=0 // pred_region
    _
  $region13: #{dqn_forward.5} parent=0 // pred_fallthru
    _
  %p15 = scmp.eq.s32.totalorder 0, 0
  // Predicated region
  $region14: #{dqn_forward.5} parent=0 // pred_check
    %p16 = pneg %p15
  $region15: #{dqn_forward.5} parent=0 // pred_check_branch
    %18 = sbr.rel (%p16) target = $region17
  $region16: #{dqn_forward.5} parent=0 // pred_region
    %vm19 = vcmask 523264
    %20 = vst.msk [vmem:[#allocation2] sm:$0xff] %vm19, 0.0
  $region17: #{dqn_forward.5} parent=0 // pred_fallthru
    _
  %v21 = vld [vmem:[#allocation2] sm:$0xff]
  %v22 = vld [vmem:[%s0] sm:$0xff]
  %v23 = vld [vmem:[%s0 + $0x8] sm:$0xff]
  %v24 = vld [vmem:[%s1] sm:$0xf]
  %v25 = vld [vmem:[%s1 + $0x4] sm:$0xf]
  %v26 = vld [vmem:[%s1 + $0x8] sm:$0xf]
  %v27 = vld [vmem:[%s1 + $0xc] sm:$0xf]
  %v28 = vld [vmem:[%s1 + $0x10] sm:$0xf]
  %v29 = vld [vmem:[%s1 + $0x14] sm:$0xf]
  %v30 = vld [vmem:[%s1 + $0x18] sm:$0xf]
  %v31 = vld [vmem:[%s1 + $0x1c] sm:$0xf]
  %v32 = vld [vmem:[%s1 + $0x20] sm:$0xf]
  %v33 = vld [vmem:[%s1 + $0x24] sm:$0xf]
  %v34 = vld [vmem:[%s1 + $0x28] sm:$0xf]
  %v35 = vld [vmem:[%s1 + $0x2c] sm:$0xf]
  %v36 = vld [vmem:[%s1 + $0x30] sm:$0xf]
  %v37 = vld [vmem:[%s1 + $0x34] sm:$0xf]
  %v38 = vld [vmem:[%s1 + $0x38] sm:$0xf]
  %v39 = vld [vmem:[%s1 + $0x3c] sm:$0xf]
  %v40 = vld [vmem:[%s1 + $0x40] sm:$0xf]
  %v41 = vld [vmem:[%s1 + $0x44] sm:$0xf]
  %v42 = vld [vmem:[%s1 + $0x48] sm:$0xf]
  %v43 = vld [vmem:[%s1 + $0x4c] sm:$0xf]
  %v44 = vld [vmem:[%s1 + $0x50] sm:$0xf]
  %v45 = vld [vmem:[%s1 + $0x54] sm:$0xf]
  %v46 = vld [vmem:[%s1 + $0x58] sm:$0xf]
  %v47 = vld [vmem:[%s1 + $0x5c] sm:$0xf]
  %v48 = vld [vmem:[%s1 + $0x60] sm:$0xf]
  %v49 = vld [vmem:[%s1 + $0x64] sm:$0xf]
  %v50 = vld [vmem:[%s1 + $0x68] sm:$0xf]
  %v51 = vld [vmem:[%s1 + $0x6c] sm:$0xf]
  %v52 = vld [vmem:[%s1 + $0x70] sm:$0xf]
  %v53 = vld [vmem:[%s1 + $0x74] sm:$0xf]
  %v54 = vld [vmem:[%s1 + $0x78] sm:$0xf]
  %v55 = vld [vmem:[%s1 + $0x7c] sm:$0xf]
  %v56 = vld [vmem:[%s1 + $0x80] sm:$0xf]
  %v57 = vld [vmem:[%s1 + $0x84] sm:$0xf]
  %v58 = vld [vmem:[%s1 + $0x88] sm:$0xf]
  %v59 = vld [vmem:[%s1 + $0x8c] sm:$0xf]
  %v60 = vld [vmem:[%s1 + $0x90] sm:$0xf]
  %v61 = vld [vmem:[%s1 + $0x94] sm:$0xf]
  %v62 = vld [vmem:[%s1 + $0x98] sm:$0xf]
  %v63 = vld [vmem:[%s1 + $0x9c] sm:$0xf]
  %v64 = vld [vmem:[%s1 + $0xa0] sm:$0xf]
  %v65 = vld [vmem:[%s1 + $0xa4] sm:$0xf]
  %v66 = vld [vmem:[%s1 + $0xa8] sm:$0xf]
  %v67 = vld [vmem:[%s1 + $0xac] sm:$0xf]
  %v68 = vld [vmem:[%s1 + $0xb0] sm:$0xf]
  %v69 = vld [vmem:[%s1 + $0xb4] sm:$0xf]
  %v70 = vld [vmem:[%s1 + $0xb8] sm:$0xf]
  %v71 = vld [vmem:[%s1 + $0xbc] sm:$0xf]
  %v72 = vld [vmem:[%s1 + $0xc0] sm:$0xf]
  %v73 = vld [vmem:[%s1 + $0xc4] sm:$0xf]
  %v74 = vld [vmem:[%s1 + $0xc8] sm:$0xf]
  %v75 = vld [vmem:[%s1 + $0xcc] sm:$0xf]
  %v76 = vld [vmem:[%s1 + $0xd0] sm:$0xf]
  %v77 = vld [vmem:[%s1 + $0xd4] sm:$0xf]
  %v78 = vld [vmem:[%s1 + $0xd8] sm:$0xf]
  %v79 = vld [vmem:[%s1 + $0xdc] sm:$0xf]
  %v80 = vld [vmem:[%s1 + $0xe0] sm:$0xf]
  %v81 = vld [vmem:[%s1 + $0xe4] sm:$0xf]
  %v82 = vld [vmem:[%s1 + $0xe8] sm:$0xf]
  %v83 = vld [vmem:[%s1 + $0xec] sm:$0xf]
  %v84 = vld [vmem:[%s1 + $0xf0] sm:$0xf]
  %v85 = vld [vmem:[%s1 + $0xf4] sm:$0xf]
  %v86 = vld [vmem:[%s1 + $0xf8] sm:$0xf]
  %v87 = vld [vmem:[%s1 + $0xfc] sm:$0xf]
  %v90 = vunpack.c.l.b16 %v22
  %v91 = vunpack.c.h.b16 %v22
  %v92 = vunpack.c.l.b16 %v23
  %v93 = vunpack.c.h.b16 %v23
  %v94 = vpack.c.b16 %v90, %v90
  %v95 = vpack.c.b16 %v91, %v91
  %v96 = vpack.c.b16 %v92, %v92
  %v97 = vpack.c.b16 %v93, %v93
  %v166 = vunpack.c.l.b16 %v24
  %v167 = vunpack.c.l.b16 %v25
  %v168 = vunpack.c.l.b16 %v26
  %v169 = vunpack.c.l.b16 %v27
  %v170 = vunpack.c.l.b16 %v28
  %v171 = vunpack.c.l.b16 %v29
  %v172 = vunpack.c.l.b16 %v30
  %v173 = vunpack.c.l.b16 %v31
  %v174 = vunpack.c.l.b16 %v32
  %v175 = vunpack.c.l.b16 %v33
  %v176 = vunpack.c.l.b16 %v34
  %v177 = vunpack.c.l.b16 %v35
  %v178 = vunpack.c.l.b16 %v36
  %v179 = vunpack.c.l.b16 %v37
  %v180 = vunpack.c.l.b16 %v38
  %v181 = vunpack.c.l.b16 %v39
  %v182 = vunpack.c.l.b16 %v40
  %v183 = vunpack.c.l.b16 %v41
  %v184 = vunpack.c.l.b16 %v42
  %v185 = vunpack.c.l.b16 %v43
  %v186 = vunpack.c.l.b16 %v44
  %v187 = vunpack.c.l.b16 %v45
  %v188 = vunpack.c.l.b16 %v46
  %v189 = vunpack.c.l.b16 %v47
  %v190 = vunpack.c.l.b16 %v48
  %v191 = vunpack.c.l.b16 %v49
  %v192 = vunpack.c.l.b16 %v50
  %v193 = vunpack.c.l.b16 %v51
  %v194 = vunpack.c.l.b16 %v52
  %v195 = vunpack.c.l.b16 %v53
  %v196 = vunpack.c.l.b16 %v54
  %v197 = vunpack.c.l.b16 %v55
  %v198 = vunpack.c.l.b16 %v56
  %v199 = vunpack.c.l.b16 %v57
  %v200 = vunpack.c.l.b16 %v58
  %v201 = vunpack.c.l.b16 %v59
  %v202 = vunpack.c.l.b16 %v60
  %v203 = vunpack.c.l.b16 %v61
  %v204 = vunpack.c.l.b16 %v62
  %v205 = vunpack.c.l.b16 %v63
  %v206 = vunpack.c.l.b16 %v64
  %v207 = vunpack.c.l.b16 %v65
  %v208 = vunpack.c.l.b16 %v66
  %v209 = vunpack.c.l.b16 %v67
  %v210 = vunpack.c.l.b16 %v68
  %v211 = vunpack.c.l.b16 %v69
  %v212 = vunpack.c.l.b16 %v70
  %v213 = vunpack.c.l.b16 %v71
  %v214 = vunpack.c.l.b16 %v72
  %v215 = vunpack.c.l.b16 %v73
  %v216 = vunpack.c.l.b16 %v74
  %v217 = vunpack.c.l.b16 %v75
  %v218 = vunpack.c.l.b16 %v76
  %v219 = vunpack.c.l.b16 %v77
  %v220 = vunpack.c.l.b16 %v78
  %v221 = vunpack.c.l.b16 %v79
  %v222 = vunpack.c.l.b16 %v80
  %v223 = vunpack.c.l.b16 %v81
  %v224 = vunpack.c.l.b16 %v82
  %v225 = vunpack.c.l.b16 %v83
  %v226 = vunpack.c.l.b16 %v84
  %v227 = vunpack.c.l.b16 %v85
  %v228 = vunpack.c.l.b16 %v86
  %v229 = vunpack.c.l.b16 %v87
  %v230 = vpack.c.b16 %v167, %v166
  %v231 = vpack.c.b16 %v169, %v168
  %v232 = vpack.c.b16 %v171, %v170
  %v233 = vpack.c.b16 %v173, %v172
  %v234 = vpack.c.b16 %v175, %v174
  %v235 = vpack.c.b16 %v177, %v176
  %v236 = vpack.c.b16 %v179, %v178
  %v237 = vpack.c.b16 %v181, %v180
  %v238 = vpack.c.b16 %v183, %v182
  %v239 = vpack.c.b16 %v185, %v184
  %v240 = vpack.c.b16 %v187, %v186
  %v241 = vpack.c.b16 %v189, %v188
  %v242 = vpack.c.b16 %v191, %v190
  %v243 = vpack.c.b16 %v193, %v192
  %v244 = vpack.c.b16 %v195, %v194
  %v245 = vpack.c.b16 %v197, %v196
  %v246 = vpack.c.b16 %v199, %v198
  %v247 = vpack.c.b16 %v201, %v200
  %v248 = vpack.c.b16 %v203, %v202
  %v249 = vpack.c.b16 %v205, %v204
  %v250 = vpack.c.b16 %v207, %v206
  %v251 = vpack.c.b16 %v209, %v208
  %v252 = vpack.c.b16 %v211, %v210
  %v253 = vpack.c.b16 %v213, %v212
  %v254 = vpack.c.b16 %v215, %v214
  %v255 = vpack.c.b16 %v217, %v216
  %v256 = vpack.c.b16 %v219, %v218
  %v257 = vpack.c.b16 %v221, %v220
  %v258 = vpack.c.b16 %v223, %v222
  %v259 = vpack.c.b16 %v225, %v224
  %v260 = vpack.c.b16 %v227, %v226
  %v261 = vpack.c.b16 %v229, %v228
  %294 = vmatprep.subr.bf16.mxu0 0
  %295 = vmatpush1.bf16.msra.mxu0 %v230
  %296 = vmatprep.subr.bf16.mxu0 0
  %297 = vmatpush1.bf16.msra.mxu0 %v231
  %298 = vmatprep.subr.bf16.mxu0 0
  %299 = vmatpush1.bf16.msra.mxu0 %v232
  %300 = vmatprep.subr.bf16.mxu0 0
  %301 = vmatpush1.bf16.msra.mxu0 %v233
  %302 = vmatprep.subr.bf16.mxu0 0
  %303 = vmatpush1.bf16.msra.mxu0 %v234
  %304 = vmatprep.subr.bf16.mxu0 0
  %305 = vmatpush1.bf16.msra.mxu0 %v235
  %306 = vmatprep.subr.bf16.mxu0 0
  %307 = vmatpush1.bf16.msra.mxu0 %v236
  %308 = vmatprep.subr.bf16.mxu0 0
  %309 = vmatpush1.bf16.msra.mxu0 %v237
  %310 = vmatprep.subr.bf16.mxu0 0
  %311 = vmatpush1.bf16.msra.mxu0 %v238
  %312 = vmatprep.subr.bf16.mxu0 0
  %313 = vmatpush1.bf16.msra.mxu0 %v239
  %314 = vmatprep.subr.bf16.mxu0 0
  %315 = vmatpush1.bf16.msra.mxu0 %v240
  %316 = vmatprep.subr.bf16.mxu0 0
  %317 = vmatpush1.bf16.msra.mxu0 %v241
  %318 = vmatprep.subr.bf16.mxu0 0
  %319 = vmatpush1.bf16.msra.mxu0 %v242
  %320 = vmatprep.subr.bf16.mxu0 0
  %321 = vmatpush1.bf16.msra.mxu0 %v243
  %322 = vmatprep.subr.bf16.mxu0 0
  %323 = vmatpush1.bf16.msra.mxu0 %v244
  %324 = vmatprep.subr.bf16.mxu0 0
  %325 = vmatpush1.bf16.msra.mxu0 %v245
  %326 = vmatprep.mubr.bf16.mxu0 %v95
  %327 = vmatmul.mubr.bf16.gmra.mrb[0].mxu0 %v94
  %v328 = vpop.f32.mrb[0].mxu0
  %v329 = vadd.f32 0.0, %v328
  %v330 = vpop.f32.mrb[0].mxu0
  %v331 = vpop.f32.mrb[0].mxu0
  %v332 = vpop.f32.mrb[0].mxu0
  %333 = vdwg.mxu0
  %334 = vmatprep.subr.bf16.mxu0 0
  %335 = vmatpush1.bf16.msra.mxu0 %v246
  %336 = vmatprep.subr.bf16.mxu0 0
  %337 = vmatpush1.bf16.msra.mxu0 %v247
  %338 = vmatprep.subr.bf16.mxu0 0
  %339 = vmatpush1.bf16.msra.mxu0 %v248
  %340 = vmatprep.subr.bf16.mxu0 0
  %341 = vmatpush1.bf16.msra.mxu0 %v249
  %342 = vmatprep.subr.bf16.mxu0 0
  %343 = vmatpush1.bf16.msra.mxu0 %v250
  %344 = vmatprep.subr.bf16.mxu0 0
  %345 = vmatpush1.bf16.msra.mxu0 %v251
  %346 = vmatprep.subr.bf16.mxu0 0
  %347 = vmatpush1.bf16.msra.mxu0 %v252
  %348 = vmatprep.subr.bf16.mxu0 0
  %349 = vmatpush1.bf16.msra.mxu0 %v253
  %350 = vmatprep.subr.bf16.mxu0 0
  %351 = vmatpush1.bf16.msra.mxu0 %v254
  %352 = vmatprep.subr.bf16.mxu0 0
  %353 = vmatpush1.bf16.msra.mxu0 %v255
  %354 = vmatprep.subr.bf16.mxu0 0
  %355 = vmatpush1.bf16.msra.mxu0 %v256
  %356 = vmatprep.subr.bf16.mxu0 0
  %357 = vmatpush1.bf16.msra.mxu0 %v257
  %358 = vmatprep.subr.bf16.mxu0 0
  %359 = vmatpush1.bf16.msra.mxu0 %v258
  %360 = vmatprep.subr.bf16.mxu0 0
  %361 = vmatpush1.bf16.msra.mxu0 %v259
  %362 = vmatprep.subr.bf16.mxu0 0
  %363 = vmatpush1.bf16.msra.mxu0 %v260
  %364 = vmatprep.subr.bf16.mxu0 0
  %365 = vmatpush1.bf16.msra.mxu0 %v261
  %366 = vmatprep.mubr.bf16.mxu0 %v97
  %367 = vmatmul.mubr.bf16.gmra.mrb[0].mxu0 %v96
  %v368 = vpop.f32.mrb[0].mxu0
  %v369 = vadd.f32 %v329, %v368
  %v370 = vpop.f32.mrb[0].mxu0
  %v371 = vpop.f32.mrb[0].mxu0
  %v372 = vpop.f32.mrb[0].mxu0
  %373 = vdwg.mxu0
  %v374 = vadd.f32 %v21, %v369
  %vm375 = vcmask 523264
  %376 = vst.msk [vmem:[#allocation2] sm:$0xff] %vm375, %v374
  // Predicated region
  $region18: #{dqn_forward.5} parent=0 // pred_check
    %p377 = pneg %p15
  $region19: #{dqn_forward.5} parent=0 // pred_check_branch
    %379 = sbr.rel (%p377) target = $region21
  $region20: #{dqn_forward.5} parent=0 // pred_region
    %v380 = vld [vmem:[#allocation2] sm:$0xff]
    %v381 = vld [vmem:[%s2] sm:$0x1]
    %v383 = vlaneseq
    %v384 = vshrl.u32 %v383, 7
    %v385 = vsub.s32 0, %v384
    %v386 = vrot.slane %v381, %v385
    %v388 = vadd.f32 %v380, %v386
    %v389 = vmax.f32 %v388, 0.0
    %v390 = vpack.c.bf16 %v389, %v389
    %vm391 = vcmask 519168
    %392 = vst.msk [vmem:[%s3] sm:$0xf] %vm391, %v390
  $region21: #{dqn_forward.5} parent=0 // pred_fallthru
    _
  // Predicated region
  $region22: #{dqn_forward.5} parent=0 // pred_check
    _
  $region23: #{dqn_forward.5} parent=0 // pred_check_branch
    %394 = sbr.rel (0) target = $region25
  $region24: #{dqn_forward.5} parent=0 // pred_region
    _
  $region25: #{dqn_forward.5} parent=0 // pred_fallthru
    _
  // Predicated region
  $region26: #{dqn_forward.5} parent=0 // pred_check
    _
  $region27: #{dqn_forward.5} parent=0 // pred_check_branch
    %396 = sbr.rel (0) target = $region29
  $region28: #{dqn_forward.5} parent=0 // pred_region
    _
  $region29: #{dqn_forward.5} parent=0 // pred_fallthru
    _

// kernel: dqn_forward.6
$region0: #{dqn_forward.6}
  #allocation0 [shape = 'u32[]', space=smem, size = 0x4, offset = 0x4, fixed_abs, tag = 'smem constant byte address 0x4 - core index']
  #allocation1 [shape = 'u32[144,128]{1,0:T(1,128)}', space=vmem, size = 0x12000, scoped, tag = 'internal scratch']
  #allocation2 [shape = 'f32[2,64]{1,0:T(2,128)}', space=vmem, size = 0x400, scoped, tag = 'scratch operand']
  %s0 = inlined_call_operand.vmem [shape: bf16[2,256], index: 0, kind: input, shape index: {}]
  %s1 = inlined_call_operand.vmem [shape: bf16[256,64], index: 1, kind: input, shape index: {}]
  %s2 = inlined_call_operand.vmem [shape: f32[1,64], index: 2, kind: input, shape index: {}]
  %s3 = inlined_call_operand.vmem [shape: bf16[2,64], index: 3, kind: output, shape index: {}]
  %s4 = sld [smem:[#allocation0]]
  $region30: #{dqn_forward.6} parent=0
    _
  %s6 = ssub.s32 1, %s4
  %s7 = scalar_select 0, %s6, %s4
  // Predicated region
  $region2: #{dqn_forward.6} parent=0 // pred_check
    _
  $region3: #{dqn_forward.6} parent=0 // pred_check_branch
    %9 = sbr.rel (0) target = $region5
  $region4: #{dqn_forward.6} parent=0 // pred_region
    _
  $region5: #{dqn_forward.6} parent=0 // pred_fallthru
    _
  // Predicated region
  $region6: #{dqn_forward.6} parent=0 // pred_check
    _
  $region7: #{dqn_forward.6} parent=0 // pred_check_branch
    %11 = sbr.rel (0) target = $region9
  $region8: #{dqn_forward.6} parent=0 // pred_region
    _
  $region9: #{dqn_forward.6} parent=0 // pred_fallthru
    _
  // Predicated region
  $region10: #{dqn_forward.6} parent=0 // pred_check
    _
  $region11: #{dqn_forward.6} parent=0 // pred_check_branch
    %13 = sbr.rel (0) target = $region13
  $region12: #{dqn_forward.6} parent=0 // pred_region
    _
  $region13: #{dqn_forward.6} parent=0 // pred_fallthru
    _
  %p15 = scmp.eq.s32.totalorder 0, 0
  // Predicated region
  $region14: #{dqn_forward.6} parent=0 // pred_check
    %p16 = pneg %p15
  $region15: #{dqn_forward.6} parent=0 // pred_check_branch
    %18 = sbr.rel (%p16) target = $region17
  $region16: #{dqn_forward.6} parent=0 // pred_region
    %vm19 = vcmask 517120
    %20 = vst.msk [vmem:[#allocation2] sm:$0x3] %vm19, 0.0
  $region17: #{dqn_forward.6} parent=0 // pred_fallthru
    _
  %v21 = vld [vmem:[#allocation2] sm:$0x3]
  %v22 = vld [vmem:[%s0] sm:$0x3]
  %v23 = vld [vmem:[%s1] sm:$0xf]
  %v24 = vld [vmem:[%s1 + $0x4] sm:$0xf]
  %v25 = vld [vmem:[%s1 + $0x8] sm:$0xf]
  %v26 = vld [vmem:[%s1 + $0xc] sm:$0xf]
  %v27 = vld [vmem:[%s1 + $0x10] sm:$0xf]
  %v28 = vld [vmem:[%s1 + $0x14] sm:$0xf]
  %v29 = vld [vmem:[%s1 + $0x18] sm:$0xf]
  %v30 = vld [vmem:[%s1 + $0x1c] sm:$0xf]
  %v31 = vld [vmem:[%s1 + $0x20] sm:$0xf]
  %v32 = vld [vmem:[%s1 + $0x24] sm:$0xf]
  %v33 = vld [vmem:[%s1 + $0x28] sm:$0xf]
  %v34 = vld [vmem:[%s1 + $0x2c] sm:$0xf]
  %v35 = vld [vmem:[%s1 + $0x30] sm:$0xf]
  %v36 = vld [vmem:[%s1 + $0x34] sm:$0xf]
  %v37 = vld [vmem:[%s1 + $0x38] sm:$0xf]
  %v38 = vld [vmem:[%s1 + $0x3c] sm:$0xf]
  %v39 = vld [vmem:[%s1 + $0x40] sm:$0xf]
  %v40 = vld [vmem:[%s1 + $0x44] sm:$0xf]
  %v41 = vld [vmem:[%s1 + $0x48] sm:$0xf]
  %v42 = vld [vmem:[%s1 + $0x4c] sm:$0xf]
  %v43 = vld [vmem:[%s1 + $0x50] sm:$0xf]
  %v44 = vld [vmem:[%s1 + $0x54] sm:$0xf]
  %v45 = vld [vmem:[%s1 + $0x58] sm:$0xf]
  %v46 = vld [vmem:[%s1 + $0x5c] sm:$0xf]
  %v47 = vld [vmem:[%s1 + $0x60] sm:$0xf]
  %v48 = vld [vmem:[%s1 + $0x64] sm:$0xf]
  %v49 = vld [vmem:[%s1 + $0x68] sm:$0xf]
  %v50 = vld [vmem:[%s1 + $0x6c] sm:$0xf]
  %v51 = vld [vmem:[%s1 + $0x70] sm:$0xf]
  %v52 = vld [vmem:[%s1 + $0x74] sm:$0xf]
  %v53 = vld [vmem:[%s1 + $0x78] sm:$0xf]
  %v54 = vld [vmem:[%s1 + $0x7c] sm:$0xf]
  %v57 = vunpack.c.l.s4 1966171168
  %v58 = vunpack.c.0.s8 %v57
  %v59 = vlaneseq
  %v60 = vshrl.u32 %v59, 7
  %v61 = vsub.s32 %v58, %v60
  %v62 = vrot.slane %v22, %v61
  %v63 = vcombine.high %v62, %v62
  %v65 = vunpack.c.l.s4 1966171168
  %v66 = vunpack.c.0.s8 %v65
  %v67 = vlaneseq
  %v68 = vshrl.u32 %v67, 7
  %v69 = vsub.s32 %v66, %v68
  %v70 = vrot.slane %v62, %v69
  %v72 = vunpack.c.l.s4 1966171168
  %v73 = vunpack.c.0.s8 %v72
  %v74 = vlaneseq
  %v75 = vshrl.u32 %v74, 7
  %v76 = vsub.s32 %v73, %v75
  %v77 = vrot.slane %v63, %v76
  %v112 = vunpack.c.l.b16 %v23
  %v113 = vunpack.c.l.b16 %v24
  %v114 = vunpack.c.l.b16 %v25
  %v115 = vunpack.c.l.b16 %v26
  %v116 = vunpack.c.l.b16 %v27
  %v117 = vunpack.c.l.b16 %v28
  %v118 = vunpack.c.l.b16 %v29
  %v119 = vunpack.c.l.b16 %v30
  %v120 = vunpack.c.l.b16 %v31
  %v121 = vunpack.c.l.b16 %v32
  %v122 = vunpack.c.l.b16 %v33
  %v123 = vunpack.c.l.b16 %v34
  %v124 = vunpack.c.l.b16 %v35
  %v125 = vunpack.c.l.b16 %v36
  %v126 = vunpack.c.l.b16 %v37
  %v127 = vunpack.c.l.b16 %v38
  %v128 = vunpack.c.l.b16 %v39
  %v129 = vunpack.c.l.b16 %v40
  %v130 = vunpack.c.l.b16 %v41
  %v131 = vunpack.c.l.b16 %v42
  %v132 = vunpack.c.l.b16 %v43
  %v133 = vunpack.c.l.b16 %v44
  %v134 = vunpack.c.l.b16 %v45
  %v135 = vunpack.c.l.b16 %v46
  %v136 = vunpack.c.l.b16 %v47
  %v137 = vunpack.c.l.b16 %v48
  %v138 = vunpack.c.l.b16 %v49
  %v139 = vunpack.c.l.b16 %v50
  %v140 = vunpack.c.l.b16 %v51
  %v141 = vunpack.c.l.b16 %v52
  %v142 = vunpack.c.l.b16 %v53
  %v143 = vunpack.c.l.b16 %v54
  %v144 = vpack.c.b16 %v113, %v112
  %v145 = vpack.c.b16 %v115, %v114
  %v146 = vpack.c.b16 %v117, %v116
  %v147 = vpack.c.b16 %v119, %v118
  %v148 = vpack.c.b16 %v121, %v120
  %v149 = vpack.c.b16 %v123, %v122
  %v150 = vpack.c.b16 %v125, %v124
  %v151 = vpack.c.b16 %v127, %v126
  %v152 = vpack.c.b16 %v129, %v128
  %v153 = vpack.c.b16 %v131, %v130
  %v154 = vpack.c.b16 %v133, %v132
  %v155 = vpack.c.b16 %v135, %v134
  %v156 = vpack.c.b16 %v137, %v136
  %v157 = vpack.c.b16 %v139, %v138
  %v158 = vpack.c.b16 %v141, %v140
  %v159 = vpack.c.b16 %v143, %v142
  %176 = vmatprep.subr.bf16.mxu0 0
  %177 = vmatpush1.bf16.msra.mxu0 %v144
  %178 = vmatprep.subr.bf16.mxu0 0
  %179 = vmatpush1.bf16.msra.mxu0 %v145
  %180 = vmatprep.subr.bf16.mxu0 0
  %181 = vmatpush1.bf16.msra.mxu0 %v146
  %182 = vmatprep.subr.bf16.mxu0 0
  %183 = vmatpush1.bf16.msra.mxu0 %v147
  %184 = vmatprep.subr.bf16.mxu0 0
  %185 = vmatpush1.bf16.msra.mxu0 %v148
  %186 = vmatprep.subr.bf16.mxu0 0
  %187 = vmatpush1.bf16.msra.mxu0 %v149
  %188 = vmatprep.subr.bf16.mxu0 0
  %189 = vmatpush1.bf16.msra.mxu0 %v150
  %190 = vmatprep.subr.bf16.mxu0 0
  %191 = vmatpush1.bf16.msra.mxu0 %v151
  %192 = vmatprep.subr.bf16.mxu0 0
  %193 = vmatpush1.bf16.msra.mxu0 %v152
  %194 = vmatprep.subr.bf16.mxu0 0
  %195 = vmatpush1.bf16.msra.mxu0 %v153
  %196 = vmatprep.subr.bf16.mxu0 0
  %197 = vmatpush1.bf16.msra.mxu0 %v154
  %198 = vmatprep.subr.bf16.mxu0 0
  %199 = vmatpush1.bf16.msra.mxu0 %v155
  %200 = vmatprep.subr.bf16.mxu0 0
  %201 = vmatpush1.bf16.msra.mxu0 %v156
  %202 = vmatprep.subr.bf16.mxu0 0
  %203 = vmatpush1.bf16.msra.mxu0 %v157
  %204 = vmatprep.subr.bf16.mxu0 0
  %205 = vmatpush1.bf16.msra.mxu0 %v158
  %206 = vmatprep.subr.bf16.mxu0 0
  %207 = vmatpush1.bf16.msra.mxu0 %v159
  %208 = vmatprep.mubr.bf16.mxu0 %v77
  %209 = vmatmul.mubr.bf16.gmra.mrb[0].mxu0 %v70
  %v210 = vpop.f32.mrb[0].mxu0
  %v211 = vadd.f32 0.0, %v210
  %v212 = vpop.f32.mrb[0].mxu0
  %v213 = vpop.f32.mrb[0].mxu0
  %v214 = vpop.f32.mrb[0].mxu0
  %215 = vdwg.mxu0
  %v216 = vadd.f32 %v21, %v211
  %vm217 = vcmask 517120
  %218 = vst.msk [vmem:[#allocation2] sm:$0x3] %vm217, %v216
  // Predicated region
  $region18: #{dqn_forward.6} parent=0 // pred_check
    %p219 = pneg %p15
  $region19: #{dqn_forward.6} parent=0 // pred_check_branch
    %221 = sbr.rel (%p219) target = $region21
  $region20: #{dqn_forward.6} parent=0 // pred_region
    %v222 = vld [vmem:[#allocation2] sm:$0x3]
    %v223 = vld [vmem:[%s2] sm:$0x1]
    %v225 = vlaneseq
    %v226 = vshrl.u32 %v225, 7
    %v227 = vsub.s32 0, %v226
    %v228 = vrot.slane %v223, %v227
    %v230 = vadd.f32 %v222, %v228
    %v231 = vmax.f32 %v230, 0.0
    %v232 = vpack.c.bf16 %v231, %v231
    %vm233 = vcmask 516096
    %234 = vst.msk [vmem:[%s3] sm:$0x1] %vm233, %v232
  $region21: #{dqn_forward.6} parent=0 // pred_fallthru
    _
  // Predicated region
  $region22: #{dqn_forward.6} parent=0 // pred_check
    _
  $region23: #{dqn_forward.6} parent=0 // pred_check_branch
    %236 = sbr.rel (0) target = $region25
  $region24: #{dqn_forward.6} parent=0 // pred_region
    _
  $region25: #{dqn_forward.6} parent=0 // pred_fallthru
    _
  // Predicated region
  $region26: #{dqn_forward.6} parent=0 // pred_check
    _
  $region27: #{dqn_forward.6} parent=0 // pred_check_branch
    %238 = sbr.rel (0) target = $region29
  $region28: #{dqn_forward.6} parent=0 // pred_region
    _
  $region29: #{dqn_forward.6} parent=0 // pred_fallthru
    _

// kernel: dqn_forward.7
$region0: #{dqn_forward.7}
  #allocation0 [shape = 'u32[]', space=smem, size = 0x4, offset = 0x4, fixed_abs, tag = 'smem constant byte address 0x4 - core index']
  #allocation1 [shape = 'u32[144,128]{1,0:T(1,128)}', space=vmem, size = 0x12000, scoped, tag = 'internal scratch']
  #allocation2 [shape = 'f32[2,512]{1,0:T(2,128)}', space=vmem, size = 0x1000, scoped, tag = 'scratch operand']
  %s0 = inlined_call_operand.vmem [shape: bf16[2,64], index: 0, kind: input, shape index: {}]
  %s1 = inlined_call_operand.vmem [shape: bf16[64,512], index: 1, kind: input, shape index: {}]
  %s2 = inlined_call_operand.vmem [shape: f32[1,512], index: 2, kind: input, shape index: {}]
  %s3 = inlined_call_operand.vmem [shape: bf16[512,128], index: 3, kind: input, shape index: {}]
  %s4 = inlined_call_operand.vmem [shape: f32[1,128], index: 4, kind: input, shape index: {}]
  %s5 = inlined_call_operand.hbm [shape: f32[2,128], index: 5, kind: output, shape index: {}]
  %s6 = sld [smem:[#allocation0]]
  $region38: #{dqn_forward.7} parent=0
    _
  %s8 = ssub.s32 1, %s6
  %s9 = scalar_select 0, %s8, %s6
  $region1: #{dqn_forward.7} parent=0
    #allocation3 [shape = 'u8[1024]{0}', space=vmem, size = 0x400, scoped, tag = 'output window, operand 0, single buffered']
    #allocation4 [shape = 's32[1]{0}', space=sflag, size = 0x4, scoped, tag = 'scoped memory for dqn_forward.7']
    %10 = vsyncpa [#allocation4], 0
    // Predicated region
    $region2: #{dqn_forward.7} parent=1 // pred_check
      _
    $region3: #{dqn_forward.7} parent=1 // pred_check_branch
      %12 = sbr.rel (0) target = $region5
    $region4: #{dqn_forward.7} parent=1 // pred_region
      _
    $region5: #{dqn_forward.7} parent=1 // pred_fallthru
      _
    // Predicated region
    $region6: #{dqn_forward.7} parent=1 // pred_check
      _
    $region7: #{dqn_forward.7} parent=1 // pred_check_branch
      %14 = sbr.rel (0) target = $region9
    $region8: #{dqn_forward.7} parent=1 // pred_region
      _
    $region9: #{dqn_forward.7} parent=1 // pred_fallthru
      _
    // Predicated region
    $region10: #{dqn_forward.7} parent=1 // pred_check
      _
    $region11: #{dqn_forward.7} parent=1 // pred_check_branch
      %16 = sbr.rel (0) target = $region13
    $region12: #{dqn_forward.7} parent=1 // pred_region
      _
    $region13: #{dqn_forward.7} parent=1 // pred_fallthru
      _
    // Predicated region
    $region14: #{dqn_forward.7} parent=1 // pred_check
      _
    $region15: #{dqn_forward.7} parent=1 // pred_check_branch
      %18 = sbr.rel (0) target = $region17
    $region16: #{dqn_forward.7} parent=1 // pred_region
      _
    $region17: #{dqn_forward.7} parent=1 // pred_fallthru
      _
    // Predicated region
    $region18: #{dqn_forward.7} parent=1 // pred_check
      _
    $region19: #{dqn_forward.7} parent=1 // pred_check_branch
      %20 = sbr.rel (0) target = $region21
    $region20: #{dqn_forward.7} parent=1 // pred_region
      _
    $region21: #{dqn_forward.7} parent=1 // pred_fallthru
      _
    %p22 = scmp.eq.s32.totalorder 0, 0
    // Predicated region
    $region22: #{dqn_forward.7} parent=1 // pred_check
      %p23 = pneg %p22
    $region23: #{dqn_forward.7} parent=1 // pred_check_branch
      %25 = sbr.rel (%p23) target = $region25
    $region24: #{dqn_forward.7} parent=1 // pred_region
      %26 = vst [vmem:[#allocation2] sm:$0xff] 0.0
    $region25: #{dqn_forward.7} parent=1 // pred_fallthru
      _
    %v27 = vld [vmem:[#allocation2] sm:$0xff]
    %v28 = vld [vmem:[%s0] sm:$0x1]
    %v29 = vld [vmem:[%s1] sm:$0xff]
    %v30 = vld [vmem:[%s1 + $0x8] sm:$0xff]
    %v31 = vld [vmem:[%s1 + $0x10] sm:$0xff]
    %v32 = vld [vmem:[%s1 + $0x18] sm:$0xff]
    %v33 = vld [vmem:[%s1 + $0x20] sm:$0xff]
    %v34 = vld [vmem:[%s1 + $0x28] sm:$0xff]
    %v35 = vld [vmem:[%s1 + $0x30] sm:$0xff]
    %v36 = vld [vmem:[%s1 + $0x38] sm:$0xff]
    %v37 = vld [vmem:[%s1 + $0x40] sm:$0xff]
    %v38 = vld [vmem:[%s1 + $0x48] sm:$0xff]
    %v39 = vld [vmem:[%s1 + $0x50] sm:$0xff]
    %v40 = vld [vmem:[%s1 + $0x58] sm:$0xff]
    %v41 = vld [vmem:[%s1 + $0x60] sm:$0xff]
    %v42 = vld [vmem:[%s1 + $0x68] sm:$0xff]
    %v43 = vld [vmem:[%s1 + $0x70] sm:$0xff]
    %v44 = vld [vmem:[%s1 + $0x78] sm:$0xff]
    %v61 = vunpack.c.l.b16 %v29
    %v62 = vunpack.c.h.b16 %v29
    %v63 = vunpack.c.l.b16 %v30
    %v64 = vunpack.c.h.b16 %v30
    %v65 = vunpack.c.l.b16 %v31
    %v66 = vunpack.c.h.b16 %v31
    %v67 = vunpack.c.l.b16 %v32
    %v68 = vunpack.c.h.b16 %v32
    %v69 = vunpack.c.l.b16 %v33
    %v70 = vunpack.c.h.b16 %v33
    %v71 = vunpack.c.l.b16 %v34
    %v72 = vunpack.c.h.b16 %v34
    %v73 = vunpack.c.l.b16 %v35
    %v74 = vunpack.c.h.b16 %v35
    %v75 = vunpack.c.l.b16 %v36
    %v76 = vunpack.c.h.b16 %v36
    %v77 = vunpack.c.l.b16 %v37
    %v78 = vunpack.c.h.b16 %v37
    %v79 = vunpack.c.l.b16 %v38
    %v80 = vunpack.c.h.b16 %v38
    %v81 = vunpack.c.l.b16 %v39
    %v82 = vunpack.c.h.b16 %v39
    %v83 = vunpack.c.l.b16 %v40
    %v84 = vunpack.c.h.b16 %v40
    %v85 = vunpack.c.l.b16 %v41
    %v86 = vunpack.c.h.b16 %v41
    %v87 = vunpack.c.l.b16 %v42
    %v88 = vunpack.c.h.b16 %v42
    %v89 = vunpack.c.l.b16 %v43
    %v90 = vunpack.c.h.b16 %v43
    %v91 = vunpack.c.l.b16 %v44
    %v92 = vunpack.c.h.b16 %v44
    %v93 = vpack.c.b16 %v65, %v61
    %v94 = vpack.c.b16 %v66, %v62
    %v95 = vpack.c.b16 %v67, %v63
    %v96 = vpack.c.b16 %v68, %v64
    %v97 = vpack.c.b16 %v73, %v69
    %v98 = vpack.c.b16 %v74, %v70
    %v99 = vpack.c.b16 %v75, %v71
    %v100 = vpack.c.b16 %v76, %v72
    %v101 = vpack.c.b16 %v81, %v77
    %v102 = vpack.c.b16 %v82, %v78
    %v103 = vpack.c.b16 %v83, %v79
    %v104 = vpack.c.b16 %v84, %v80
    %v105 = vpack.c.b16 %v89, %v85
    %v106 = vpack.c.b16 %v90, %v86
    %v107 = vpack.c.b16 %v91, %v87
    %v108 = vpack.c.b16 %v92, %v88
    %vm125 = vcmask 523264
    %v127 = vsel %vm125, %v28, 0
    %129 = vmatprep.subr.bf16.mxu0 %v94
    %130 = vmatpush1.bf16.msra.mxu0 %v93
    %131 = vmatprep.subr.bf16.mxu0 %v98
    %132 = vmatpush1.bf16.msra.mxu0 %v97
    %133 = vmatprep.subr.bf16.mxu0 %v102
    %134 = vmatpush1.bf16.msra.mxu0 %v101
    %135 = vmatprep.subr.bf16.mxu0 %v106
    %136 = vmatpush1.bf16.msra.mxu0 %v105
    %137 = vmatprep.subr.bf16.mxu0 0
    %138 = vmatpush1.bf16.msra.mxu0 0
    %139 = vmatprep.subr.bf16.mxu0 0
    %140 = vmatpush1.bf16.msra.mxu0 0
    %141 = vmatprep.subr.bf16.mxu0 0
    %142 = vmatpush1.bf16.msra.mxu0 0
    %143 = vmatprep.subr.bf16.mxu0 0
    %144 = vmatpush1.bf16.msra.mxu0 0
    %145 = vmatprep.subr.bf16.mxu0 0
    %146 = vmatpush1.bf16.msra.mxu0 0
    %147 = vmatprep.subr.bf16.mxu0 0
    %148 = vmatpush1.bf16.msra.mxu0 0
    %149 = vmatprep.subr.bf16.mxu0 0
    %150 = vmatpush1.bf16.msra.mxu0 0
    %151 = vmatprep.subr.bf16.mxu0 0
    %152 = vmatpush1.bf16.msra.mxu0 0
    %153 = vmatprep.subr.bf16.mxu0 0
    %154 = vmatpush1.bf16.msra.mxu0 0
    %155 = vmatprep.subr.bf16.mxu0 0
    %156 = vmatpush1.bf16.msra.mxu0 0
    %157 = vmatprep.subr.bf16.mxu0 0
    %158 = vmatpush1.bf16.msra.mxu0 0
    %159 = vmatprep.subr.bf16.mxu0 0
    %160 = vmatpush1.bf16.msra.mxu0 0
    %161 = vmatprep.mubr.bf16.mxu0 0
    %162 = vmatmul.mubr.bf16.gmra.mrb[0].mxu0 %v127
    %v163 = vpop.f32.mrb[0].mxu0
    %v164 = vadd.f32 0.0, %v163
    %v165 = vpop.f32.mrb[0].mxu0
    %v166 = vadd.f32 0.0, %v165
    %v167 = vpop.f32.mrb[0].mxu0
    %v168 = vpop.f32.mrb[0].mxu0
    %169 = vdwg.mxu0
    %170 = vmatprep.subr.bf16.mxu0 %v96
    %171 = vmatpush1.bf16.msra.mxu0 %v95
    %172 = vmatprep.subr.bf16.mxu0 %v100
    %173 = vmatpush1.bf16.msra.mxu0 %v99
    %174 = vmatprep.subr.bf16.mxu0 %v104
    %175 = vmatpush1.bf16.msra.mxu0 %v103
    %176 = vmatprep.subr.bf16.mxu0 %v108
    %177 = vmatpush1.bf16.msra.mxu0 %v107
    %178 = vmatprep.subr.bf16.mxu0 0
    %179 = vmatpush1.bf16.msra.mxu0 0
    %180 = vmatprep.subr.bf16.mxu0 0
    %181 = vmatpush1.bf16.msra.mxu0 0
    %182 = vmatprep.subr.bf16.mxu0 0
    %183 = vmatpush1.bf16.msra.mxu0 0
    %184 = vmatprep.subr.bf16.mxu0 0
    %185 = vmatpush1.bf16.msra.mxu0 0
    %186 = vmatprep.subr.bf16.mxu0 0
    %187 = vmatpush1.bf16.msra.mxu0 0
    %188 = vmatprep.subr.bf16.mxu0 0
    %189 = vmatpush1.bf16.msra.mxu0 0
    %190 = vmatprep.subr.bf16.mxu0 0
    %191 = vmatpush1.bf16.msra.mxu0 0
    %192 = vmatprep.subr.bf16.mxu0 0
    %193 = vmatpush1.bf16.msra.mxu0 0
    %194 = vmatprep.subr.bf16.mxu0 0
    %195 = vmatpush1.bf16.msra.mxu0 0
    %196 = vmatprep.subr.bf16.mxu0 0
    %197 = vmatpush1.bf16.msra.mxu0 0
    %198 = vmatprep.subr.bf16.mxu0 0
    %199 = vmatpush1.bf16.msra.mxu0 0
    %200 = vmatprep.subr.bf16.mxu0 0
    %201 = vmatpush1.bf16.msra.mxu0 0
    %202 = vmatprep.mubr.bf16.mxu0 0
    %203 = vmatmul.mubr.bf16.gmra.mrb[0].mxu0 %v127
    %v204 = vpop.f32.mrb[0].mxu0
    %v205 = vadd.f32 0.0, %v204
    %v206 = vpop.f32.mrb[0].mxu0
    %v207 = vadd.f32 0.0, %v206
    %v208 = vpop.f32.mrb[0].mxu0
    %v209 = vpop.f32.mrb[0].mxu0
    %210 = vdwg.mxu0
    %v215 = vcombine.low %v164, %v166
    %v216 = vcombine.low %v205, %v207
    %v218 = vunpack.c.l.s4 1983009808
    %v219 = vunpack.c.0.s8 %v218
    %v220 = vlaneseq
    %v221 = vshrl.u32 %v220, 7
    %v222 = vsub.s32 %v219, %v221
    %v223 = vrot.slane %v215, %v222
    %v225 = vunpack.c.l.s4 1983009808
    %v226 = vunpack.c.0.s8 %v225
    %v227 = vlaneseq
    %v228 = vshrl.u32 %v227, 7
    %v229 = vsub.s32 %v226, %v228
    %v230 = vrot.slane %v216, %v229
    %v231 = vcombine.low %v223, %v230
    %v233 = vadd.f32 %v27, %v231
    %234 = vst [vmem:[#allocation2] sm:$0xff] %v233
    // Predicated region
    $region26: #{dqn_forward.7} parent=1 // pred_check
      %p235 = pneg %p22
    $region27: #{dqn_forward.7} parent=1 // pred_check_branch
      %237 = sbr.rel (%p235) target = $region29
    $region28: #{dqn_forward.7} parent=1 // pred_region
      %v238 = vld [vmem:[#allocation2] sm:$0xff]
      %v239 = vld [vmem:[%s2] sm:$0xf]
      %v241 = vlaneseq
      %v242 = vshrl.u32 %v241, 7
      %v243 = vsub.s32 0, %v242
      %v244 = vrot.slane %v239, %v243
      %v245 = vlaneseq
      %v246 = vshrl.u32 %v245, 7
      %v247 = vsub.s32 1, %v246
      %v248 = vrot.slane %v239, %v247
      %v249 = vlaneseq
      %v250 = vshrl.u32 %v249, 7
      %v251 = vsub.s32 2, %v250
      %v252 = vrot.slane %v239, %v251
      %v253 = vlaneseq
      %v254 = vshrl.u32 %v253, 7
      %v255 = vsub.s32 3, %v254
      %v256 = vrot.slane %v239, %v255
      %v257 = vcombine.low %v244, %v248
      %v258 = vcombine.low %v252, %v256
      %v260 = vunpack.c.l.s4 1983009808
      %v261 = vunpack.c.0.s8 %v260
      %v262 = vlaneseq
      %v263 = vshrl.u32 %v262, 7
      %v264 = vsub.s32 %v261, %v263
      %v265 = vrot.slane %v257, %v264
      %v267 = vunpack.c.l.s4 1983009808
      %v268 = vunpack.c.0.s8 %v267
      %v269 = vlaneseq
      %v270 = vshrl.u32 %v269, 7
      %v271 = vsub.s32 %v268, %v270
      %v272 = vrot.slane %v258, %v271
      %v273 = vcombine.low %v265, %v272
      %v275 = vadd.f32 %v238, %v273
      %v276 = vmax.f32 %v275, 0.0
      %v278 = vcombine.high %v276, %v276
      %v280 = vunpack.c.l.s4 1983009808
      %v281 = vunpack.c.0.s8 %v280
      %v282 = vlaneseq
      %v283 = vshrl.u32 %v282, 7
      %v284 = vsub.s32 %v281, %v283
      %v285 = vrot.slane %v276, %v284
      %v287 = vunpack.c.l.s4 1983009808
      %v288 = vunpack.c.0.s8 %v287
      %v289 = vlaneseq
      %v290 = vshrl.u32 %v289, 7
      %v291 = vsub.s32 %v288, %v290
      %v292 = vrot.slane %v278, %v291
      %v293 = vcombine.high %v285, %v285
      %v294 = vcombine.high %v292, %v292
      %v299 = vpack.c.bf16 %v285, %v285
      %v300 = vpack.c.bf16 %v293, %v293
      %v301 = vpack.c.bf16 %v292, %v292
      %v302 = vpack.c.bf16 %v294, %v294
      %v303 = vld [vmem:[%s3] sm:$0xf]
      %v304 = vld [vmem:[%s3 + $0x4] sm:$0xf]
      %v305 = vld [vmem:[%s3 + $0x8] sm:$0xf]
      %v306 = vld [vmem:[%s3 + $0xc] sm:$0xf]
      %v307 = vld [vmem:[%s3 + $0x10] sm:$0xf]
      %v308 = vld [vmem:[%s3 + $0x14] sm:$0xf]
      %v309 = vld [vmem:[%s3 + $0x18] sm:$0xf]
      %v310 = vld [vmem:[%s3 + $0x1c] sm:$0xf]
      %v311 = vld [vmem:[%s3 + $0x20] sm:$0xf]
      %v312 = vld [vmem:[%s3 + $0x24] sm:$0xf]
      %v313 = vld [vmem:[%s3 + $0x28] sm:$0xf]
      %v314 = vld [vmem:[%s3 + $0x2c] sm:$0xf]
      %v315 = vld [vmem:[%s3 + $0x30] sm:$0xf]
      %v316 = vld [vmem:[%s3 + $0x34] sm:$0xf]
      %v317 = vld [vmem:[%s3 + $0x38] sm:$0xf]
      %v318 = vld [vmem:[%s3 + $0x3c] sm:$0xf]
      %v319 = vld [vmem:[%s3 + $0x40] sm:$0xf]
      %v320 = vld [vmem:[%s3 + $0x44] sm:$0xf]
      %v321 = vld [vmem:[%s3 + $0x48] sm:$0xf]
      %v322 = vld [vmem:[%s3 + $0x4c] sm:$0xf]
      %v323 = vld [vmem:[%s3 + $0x50] sm:$0xf]
      %v324 = vld [vmem:[%s3 + $0x54] sm:$0xf]
      %v325 = vld [vmem:[%s3 + $0x58] sm:$0xf]
      %v326 = vld [vmem:[%s3 + $0x5c] sm:$0xf]
      %v327 = vld [vmem:[%s3 + $0x60] sm:$0xf]
      %v328 = vld [vmem:[%s3 + $0x64] sm:$0xf]
      %v329 = vld [vmem:[%s3 + $0x68] sm:$0xf]
      %v330 = vld [vmem:[%s3 + $0x6c] sm:$0xf]
      %v331 = vld [vmem:[%s3 + $0x70] sm:$0xf]
      %v332 = vld [vmem:[%s3 + $0x74] sm:$0xf]
      %v333 = vld [vmem:[%s3 + $0x78] sm:$0xf]
      %v334 = vld [vmem:[%s3 + $0x7c] sm:$0xf]
      %v335 = vld [vmem:[%s3 + $0x80] sm:$0xf]
      %v336 = vld [vmem:[%s3 + $0x84] sm:$0xf]
      %v337 = vld [vmem:[%s3 + $0x88] sm:$0xf]
      %v338 = vld [vmem:[%s3 + $0x8c] sm:$0xf]
      %v339 = vld [vmem:[%s3 + $0x90] sm:$0xf]
      %v340 = vld [vmem:[%s3 + $0x94] sm:$0xf]
      %v341 = vld [vmem:[%s3 + $0x98] sm:$0xf]
      %v342 = vld [vmem:[%s3 + $0x9c] sm:$0xf]
      %v343 = vld [vmem:[%s3 + $0xa0] sm:$0xf]
      %v344 = vld [vmem:[%s3 + $0xa4] sm:$0xf]
      %v345 = vld [vmem:[%s3 + $0xa8] sm:$0xf]
      %v346 = vld [vmem:[%s3 + $0xac] sm:$0xf]
      %v347 = vld [vmem:[%s3 + $0xb0] sm:$0xf]
      %v348 = vld [vmem:[%s3 + $0xb4] sm:$0xf]
      %v349 = vld [vmem:[%s3 + $0xb8] sm:$0xf]
      %v350 = vld [vmem:[%s3 + $0xbc] sm:$0xf]
      %v351 = vld [vmem:[%s3 + $0xc0] sm:$0xf]
      %v352 = vld [vmem:[%s3 + $0xc4] sm:$0xf]
      %v353 = vld [vmem:[%s3 + $0xc8] sm:$0xf]
      %v354 = vld [vmem:[%s3 + $0xcc] sm:$0xf]
      %v355 = vld [vmem:[%s3 + $0xd0] sm:$0xf]
      %v356 = vld [vmem:[%s3 + $0xd4] sm:$0xf]
      %v357 = vld [vmem:[%s3 + $0xd8] sm:$0xf]
      %v358 = vld [vmem:[%s3 + $0xdc] sm:$0xf]
      %v359 = vld [vmem:[%s3 + $0xe0] sm:$0xf]
      %v360 = vld [vmem:[%s3 + $0xe4] sm:$0xf]
      %v361 = vld [vmem:[%s3 + $0xe8] sm:$0xf]
      %v362 = vld [vmem:[%s3 + $0xec] sm:$0xf]
      %v363 = vld [vmem:[%s3 + $0xf0] sm:$0xf]
      %v364 = vld [vmem:[%s3 + $0xf4] sm:$0xf]
      %v365 = vld [vmem:[%s3 + $0xf8] sm:$0xf]
      %v366 = vld [vmem:[%s3 + $0xfc] sm:$0xf]
      %v367 = vld [vmem:[%s4] sm:$0x1]
      %v369 = vlaneseq
      %v370 = vshrl.u32 %v369, 7
      %v371 = vsub.s32 0, %v370
      %v372 = vrot.slane %v367, %v371
      %v438 = vunpack.c.l.b16 %v303
      %v439 = vunpack.c.l.b16 %v304
      %v440 = vunpack.c.l.b16 %v305
      %v441 = vunpack.c.l.b16 %v306
      %v442 = vunpack.c.l.b16 %v307
      %v443 = vunpack.c.l.b16 %v308
      %v444 = vunpack.c.l.b16 %v309
      %v445 = vunpack.c.l.b16 %v310
      %v446 = vunpack.c.l.b16 %v311
      %v447 = vunpack.c.l.b16 %v312
      %v448 = vunpack.c.l.b16 %v313
      %v449 = vunpack.c.l.b16 %v314
      %v450 = vunpack.c.l.b16 %v315
      %v451 = vunpack.c.l.b16 %v316
      %v452 = vunpack.c.l.b16 %v317
      %v453 = vunpack.c.l.b16 %v318
      %v454 = vunpack.c.l.b16 %v319
      %v455 = vunpack.c.l.b16 %v320
      %v456 = vunpack.c.l.b16 %v321
      %v457 = vunpack.c.l.b16 %v322
      %v458 = vunpack.c.l.b16 %v323
      %v459 = vunpack.c.l.b16 %v324
      %v460 = vunpack.c.l.b16 %v325
      %v461 = vunpack.c.l.b16 %v326
      %v462 = vunpack.c.l.b16 %v327
      %v463 = vunpack.c.l.b16 %v328
      %v464 = vunpack.c.l.b16 %v329
      %v465 = vunpack.c.l.b16 %v330
      %v466 = vunpack.c.l.b16 %v331
      %v467 = vunpack.c.l.b16 %v332
      %v468 = vunpack.c.l.b16 %v333
      %v469 = vunpack.c.l.b16 %v334
      %v470 = vunpack.c.l.b16 %v335
      %v471 = vunpack.c.l.b16 %v336
      %v472 = vunpack.c.l.b16 %v337
      %v473 = vunpack.c.l.b16 %v338
      %v474 = vunpack.c.l.b16 %v339
      %v475 = vunpack.c.l.b16 %v340
      %v476 = vunpack.c.l.b16 %v341
      %v477 = vunpack.c.l.b16 %v342
      %v478 = vunpack.c.l.b16 %v343
      %v479 = vunpack.c.l.b16 %v344
      %v480 = vunpack.c.l.b16 %v345
      %v481 = vunpack.c.l.b16 %v346
      %v482 = vunpack.c.l.b16 %v347
      %v483 = vunpack.c.l.b16 %v348
      %v484 = vunpack.c.l.b16 %v349
      %v485 = vunpack.c.l.b16 %v350
      %v486 = vunpack.c.l.b16 %v351
      %v487 = vunpack.c.l.b16 %v352
      %v488 = vunpack.c.l.b16 %v353
      %v489 = vunpack.c.l.b16 %v354
      %v490 = vunpack.c.l.b16 %v355
      %v491 = vunpack.c.l.b16 %v356
      %v492 = vunpack.c.l.b16 %v357
      %v493 = vunpack.c.l.b16 %v358
      %v494 = vunpack.c.l.b16 %v359
      %v495 = vunpack.c.l.b16 %v360
      %v496 = vunpack.c.l.b16 %v361
      %v497 = vunpack.c.l.b16 %v362
      %v498 = vunpack.c.l.b16 %v363
      %v499 = vunpack.c.l.b16 %v364
      %v500 = vunpack.c.l.b16 %v365
      %v501 = vunpack.c.l.b16 %v366
      %v502 = vpack.c.b16 %v439, %v438
      %v503 = vpack.c.b16 %v441, %v440
      %v504 = vpack.c.b16 %v443, %v442
      %v505 = vpack.c.b16 %v445, %v444
      %v506 = vpack.c.b16 %v447, %v446
      %v507 = vpack.c.b16 %v449, %v448
      %v508 = vpack.c.b16 %v451, %v450
      %v509 = vpack.c.b16 %v453, %v452
      %v510 = vpack.c.b16 %v455, %v454
      %v511 = vpack.c.b16 %v457, %v456
      %v512 = vpack.c.b16 %v459, %v458
      %v513 = vpack.c.b16 %v461, %v460
      %v514 = vpack.c.b16 %v463, %v462
      %v515 = vpack.c.b16 %v465, %v464
      %v516 = vpack.c.b16 %v467, %v466
      %v517 = vpack.c.b16 %v469, %v468
      %v518 = vpack.c.b16 %v471, %v470
      %v519 = vpack.c.b16 %v473, %v472
      %v520 = vpack.c.b16 %v475, %v474
      %v521 = vpack.c.b16 %v477, %v476
      %v522 = vpack.c.b16 %v479, %v478
      %v523 = vpack.c.b16 %v481, %v480
      %v524 = vpack.c.b16 %v483, %v482
      %v525 = vpack.c.b16 %v485, %v484
      %v526 = vpack.c.b16 %v487, %v486
      %v527 = vpack.c.b16 %v489, %v488
      %v528 = vpack.c.b16 %v491, %v490
      %v529 = vpack.c.b16 %v493, %v492
      %v530 = vpack.c.b16 %v495, %v494
      %v531 = vpack.c.b16 %v497, %v496
      %v532 = vpack.c.b16 %v499, %v498
      %v533 = vpack.c.b16 %v501, %v500
      %566 = vmatprep.subr.bf16.mxu0 0
      %567 = vmatpush1.bf16.msra.mxu0 %v502
      %568 = vmatprep.subr.bf16.mxu0 0
      %569 = vmatpush1.bf16.msra.mxu0 %v503
      %570 = vmatprep.subr.bf16.mxu0 0
      %571 = vmatpush1.bf16.msra.mxu0 %v504
      %572 = vmatprep.subr.bf16.mxu0 0
      %573 = vmatpush1.bf16.msra.mxu0 %v505
      %574 = vmatprep.subr.bf16.mxu0 0
      %575 = vmatpush1.bf16.msra.mxu0 %v506
      %576 = vmatprep.subr.bf16.mxu0 0
      %577 = vmatpush1.bf16.msra.mxu0 %v507
      %578 = vmatprep.subr.bf16.mxu0 0
      %579 = vmatpush1.bf16.msra.mxu0 %v508
      %580 = vmatprep.subr.bf16.mxu0 0
      %581 = vmatpush1.bf16.msra.mxu0 %v509
      %582 = vmatprep.subr.bf16.mxu0 0
      %583 = vmatpush1.bf16.msra.mxu0 %v510
      %584 = vmatprep.subr.bf16.mxu0 0
      %585 = vmatpush1.bf16.msra.mxu0 %v511
      %586 = vmatprep.subr.bf16.mxu0 0
      %587 = vmatpush1.bf16.msra.mxu0 %v512
      %588 = vmatprep.subr.bf16.mxu0 0
      %589 = vmatpush1.bf16.msra.mxu0 %v513
      %590 = vmatprep.subr.bf16.mxu0 0
      %591 = vmatpush1.bf16.msra.mxu0 %v514
      %592 = vmatprep.subr.bf16.mxu0 0
      %593 = vmatpush1.bf16.msra.mxu0 %v515
      %594 = vmatprep.subr.bf16.mxu0 0
      %595 = vmatpush1.bf16.msra.mxu0 %v516
      %596 = vmatprep.subr.bf16.mxu0 0
      %597 = vmatpush1.bf16.msra.mxu0 %v517
      %598 = vmatprep.mubr.bf16.mxu0 %v300
      %599 = vmatmul.mubr.bf16.gmra.mrb[0].mxu0 %v299
      %v600 = vpop.f32.mrb[0].mxu0
      %v601 = vadd.f32 %v372, %v600
      %v602 = vpop.f32.mrb[0].mxu0
      %v603 = vpop.f32.mrb[0].mxu0
      %v604 = vpop.f32.mrb[0].mxu0
      %605 = vdwg.mxu0
      %606 = vmatprep.subr.bf16.mxu0 0
      %607 = vmatpush1.bf16.msra.mxu0 %v518
      %608 = vmatprep.subr.bf16.mxu0 0
      %609 = vmatpush1.bf16.msra.mxu0 %v519
      %610 = vmatprep.subr.bf16.mxu0 0
      %611 = vmatpush1.bf16.msra.mxu0 %v520
      %612 = vmatprep.subr.bf16.mxu0 0
      %613 = vmatpush1.bf16.msra.mxu0 %v521
      %614 = vmatprep.subr.bf16.mxu0 0
      %615 = vmatpush1.bf16.msra.mxu0 %v522
      %616 = vmatprep.subr.bf16.mxu0 0
      %617 = vmatpush1.bf16.msra.mxu0 %v523
      %618 = vmatprep.subr.bf16.mxu0 0
      %619 = vmatpush1.bf16.msra.mxu0 %v524
      %620 = vmatprep.subr.bf16.mxu0 0
      %621 = vmatpush1.bf16.msra.mxu0 %v525
      %622 = vmatprep.subr.bf16.mxu0 0
      %623 = vmatpush1.bf16.msra.mxu0 %v526
      %624 = vmatprep.subr.bf16.mxu0 0
      %625 = vmatpush1.bf16.msra.mxu0 %v527
      %626 = vmatprep.subr.bf16.mxu0 0
      %627 = vmatpush1.bf16.msra.mxu0 %v528
      %628 = vmatprep.subr.bf16.mxu0 0
      %629 = vmatpush1.bf16.msra.mxu0 %v529
      %630 = vmatprep.subr.bf16.mxu0 0
      %631 = vmatpush1.bf16.msra.mxu0 %v530
      %632 = vmatprep.subr.bf16.mxu0 0
      %633 = vmatpush1.bf16.msra.mxu0 %v531
      %634 = vmatprep.subr.bf16.mxu0 0
      %635 = vmatpush1.bf16.msra.mxu0 %v532
      %636 = vmatprep.subr.bf16.mxu0 0
      %637 = vmatpush1.bf16.msra.mxu0 %v533
      %638 = vmatprep.mubr.bf16.mxu0 %v302
      %639 = vmatmul.mubr.bf16.gmra.mrb[0].mxu0 %v301
      %v640 = vpop.f32.mrb[0].mxu0
      %v641 = vadd.f32 %v601, %v640
      %v642 = vpop.f32.mrb[0].mxu0
      %v643 = vpop.f32.mrb[0].mxu0
      %v644 = vpop.f32.mrb[0].mxu0
      %645 = vdwg.mxu0
      %646 = vst [vmem:[#allocation3] sm:$0x3] %v641
    $region29: #{dqn_forward.7} parent=1 // pred_fallthru
      _
    // Predicated region
    $region30: #{dqn_forward.7} parent=1 // pred_check
      _
    $region31: #{dqn_forward.7} parent=1 // pred_check_branch
      %648 = sbr.rel (0) target = $region33
    $region32: #{dqn_forward.7} parent=1 // pred_region
      %s650 = ssub.s32 32, 32
      %651 = vsyncadd [#allocation4], %s650
      %s653 = sshll.u32 [#allocation3], 4
      %s654 = int_to_ptr.vmem [resolvable:$true] %s653
      %656 = dma.vmem_to_hbm [thread:$0]  %s654, 32, %s5, [#allocation4]
    $region33: #{dqn_forward.7} parent=1 // pred_fallthru
      _
    // Predicated region
    $region34: #{dqn_forward.7} parent=1 // pred_check
      _
    $region35: #{dqn_forward.7} parent=1 // pred_check_branch
      %658 = sbr.rel (0) target = $region37
    $region36: #{dqn_forward.7} parent=1 // pred_region
      %659 = dma.done [#allocation4], 32
    $region37: #{dqn_forward.7} parent=1 // pred_fallthru
      _
    %660 = vsyncpa [#allocation4], 1

</llo_original>
